<compile_context>
chip_gen: v5e
topology: v5e:2x2
jax: 0.10.0
libtpu: 0.0.40
codegen_flags: <defaults>
</compile_context>

<pallas_src>
import math
import functools

import jax
import jax.numpy as jnp
from jax import lax
from jax.experimental import pallas as pl
from jax.experimental.pallas import tpu as pltpu

# ----- model hyperparameters (small, consistent with the module) -----
B = 2            # batch
S = 8            # sequence length
D = 32           # input_dim
H = 4            # num_heads
HD = D // H      # head dim
FF = 2 * D       # dim_feedforward (default: input_dim * 2)
NUM_LAYERS = 2
EPS = 1e-5       # nn.LayerNorm default eps
NEG_INF = -1e30  # additive mask value (exp underflows to exactly 0)


def _layernorm(x, w, b):
    m = jnp.mean(x, axis=-1, keepdims=True)
    v = jnp.mean((x - m) ** 2, axis=-1, keepdims=True)
    return (x - m) * lax.rsqrt(v + EPS) * w + b


def transformer_encoder_kernel(x_ref, mask_ref,
                               in_wT_ref, in_b_ref, out_wT_ref, out_b_ref,
                               n1w_ref, n1b_ref,
                               l1wT_ref, l1b_ref, l2wT_ref, l2b_ref,
                               n2w_ref, n2b_ref,
                               o_ref,
                               *, num_layers, dim, heads):
    """All encoder layers fused; activations never leave VMEM.

    x_ref / o_ref: (B*S, D) f32.  mask_ref: (B*S, B*S) additive block-diagonal
    mask (0 within a batch, -1e30 across batches).  Per-layer params are
    stacked along a leading layer axis and arrive pre-transposed
    ((in_features, out_features) layout), with the attention scale already
    folded into the Q projection.
    """
    hd = dim // heads
    x = x_ref[...]                                      # (B*S, D)
    mask = mask_ref[...]                                # (B*S, B*S), hoisted

    for l in range(num_layers):                         # static unroll
        # ---------------- multi-head self-attention ----------------
        qkv = jnp.dot(x, in_wT_ref[l],
                      preferred_element_type=jnp.float32) + in_b_ref[l]
        q = qkv[:, 0 * dim:1 * dim]
        k = qkv[:, 1 * dim:2 * dim]
        v = qkv[:, 2 * dim:3 * dim]

        # head split via static lane-offset slices only: (B*S, D) -> (H, B*S, HD)
        def to_heads(t):
            return jnp.stack([t[:, h * hd:(h + 1) * hd] for h in range(heads)],
                             axis=0)

        qh, kh, vh = to_heads(q), to_heads(k), to_heads(v)

        # scores over the flattened row axis; cross-batch entries masked out.
        s = jnp.einsum("hqd,hkd->hqk", qh, kh,
                       preferred_element_type=jnp.float32)      # (H, BS, BS)
        s = s + mask
        s = s - jnp.max(s, axis=-1, keepdims=True)
        p = jnp.exp(s)
        p = p * pl.reciprocal(jnp.sum(p, axis=-1, keepdims=True), approx=True)
        ctx = jnp.einsum("hqk,hkd->hqd", p, vh,
                         preferred_element_type=jnp.float32)    # (H, BS, HD)

        # merge heads back to (B*S, D) with lane-axis concatenation only
        attn = jnp.concatenate([ctx[h] for h in range(heads)], axis=-1)

        attn_out = jnp.dot(attn, out_wT_ref[l],
                           preferred_element_type=jnp.float32) + out_b_ref[l]

        # ---------------- residual + LayerNorm1 (dropout p=0) ----------------
        x1 = _layernorm(x + attn_out, n1w_ref[l], n1b_ref[l])

        # ---------------- feed-forward: Linear -> ReLU -> Linear ----------------
        h1 = jnp.dot(x1, l1wT_ref[l],
                     preferred_element_type=jnp.float32) + l1b_ref[l]
        h1 = jnp.maximum(h1, 0.0)
        ff = jnp.dot(h1, l2wT_ref[l],
                     preferred_element_type=jnp.float32) + l2b_ref[l]

        # ---------------- residual + LayerNorm2 ----------------
        x = _layernorm(x1 + ff, n2w_ref[l], n2b_ref[l])

    o_ref[...] = x      # one lane-dense slab store


def prep_kernel_params(layer_params):
    """PyTorch-layout per-layer params -> stacked, pre-transposed kernel params.

    Also folds the 1/sqrt(head_dim) attention scale into the Q rows of the
    packed in_proj weight/bias so the kernel does no score scaling.
    """
    scale = 1.0 / math.sqrt(HD)
    cols = [[] for _ in range(12)]
    for (iw, ib, ow, ob, w1, b1, lw1, lb1, lw2, lb2, w2, b2) in layer_params:
        iw = iw.at[:D, :].multiply(scale)
        ib = ib.at[:D].multiply(scale)
        vals = [iw.T, ib[None, :],          # (D, 3D), (1, 3D)
                ow.T, ob[None, :],          # (D, D),  (1, D)
                w1[None, :], b1[None, :],   # norm1
                lw1.T, lb1[None, :],        # (D, FF), (1, FF)
                lw2.T, lb2[None, :],        # (FF, D), (1, D)
                w2[None, :], b2[None, :]]   # norm2
        for c, vv in zip(cols, vals):
            c.append(vv)
    return [jnp.stack(c, axis=0) for c in cols]


def transformer_encoder_pallas(x, layer_params):
    """Single fused pallas_call over all layers, no grid (whole model in VMEM)."""
    b_, s_, d_ = x.shape
    kparams = prep_kernel_params(layer_params)

    # block-diagonal additive mask separating batches on the flattened row axis
    row = jnp.arange(b_ * s_, dtype=jnp.int32) // s_
    mask = jnp.where(row[:, None] == row[None, :], 0.0, NEG_INF).astype(jnp.float32)

    kernel = functools.partial(
        transformer_encoder_kernel,
        num_layers=len(layer_params), dim=d_, heads=H)
    n_in = 2 + len(kparams)
    out = pl.pallas_call(
        kernel,
        out_shape=jax.ShapeDtypeStruct((b_ * s_, d_), jnp.float32),
        in_specs=[pl.BlockSpec(memory_space=pltpu.MemorySpace.VMEM)
                  for _ in range(n_in)],
        out_specs=pl.BlockSpec(memory_space=pltpu.MemorySpace.VMEM),
    )(x.reshape(b_ * s_, d_), mask, *kparams)
    return out.reshape(b_, s_, d_)


# ---------------- deterministic parameter init (PyTorch layout) ----------------
def init_block_params(key):
    ks = jax.random.split(key, 6)
    scale = 0.05
    in_w = scale * jax.random.normal(ks[0], (3 * D, D), jnp.float32)
    in_b = scale * jax.random.normal(ks[1], (3 * D,), jnp.float32)
    out_w = scale * jax.random.normal(ks[2], (D, D), jnp.float32)
    out_b = scale * jax.random.normal(ks[3], (D,), jnp.float32)
    n1w = jnp.ones((D,), jnp.float32)
    n1b = jnp.zeros((D,), jnp.float32)
    l1w = scale * jax.random.normal(ks[4], (FF, D), jnp.float32)
    l1b = jnp.zeros((FF,), jnp.float32)
    l2w = scale * jax.random.normal(ks[5], (D, FF), jnp.float32)
    l2b = jnp.zeros((D,), jnp.float32)
    n2w = jnp.ones((D,), jnp.float32)
    n2b = jnp.zeros((D,), jnp.float32)
    return [in_w, in_b, out_w, out_b, n1w, n1b, l1w, l1b, l2w, l2b, n2w, n2b]


# ---------------- pure-JAX reference (for correctness check) ----------------
def ref_block(x, params):
    (in_w, in_b, out_w, out_b, n1w, n1b, l1w, l1b, l2w, l2b, n2w, n2b) = params
    b_, s_, d_ = x.shape
    qkv = x @ in_w.T + in_b
    q, k, v = jnp.split(qkv, 3, axis=-1)

    def split_heads(t):
        return t.reshape(b_, s_, H, HD).transpose(0, 2, 1, 3)

    qh, kh, vh = split_heads(q), split_heads(k), split_heads(v)
    s = jnp.einsum("bhqd,bhkd->bhqk", qh, kh) / math.sqrt(HD)
    p = jax.nn.softmax(s, axis=-1)
    a = jnp.einsum("bhqk,bhkd->bhqd", p, vh).transpose(0, 2, 1, 3).reshape(b_, s_, d_)
    attn_out = a @ out_w.T + out_b

    def ln(t, w, b):
        m = jnp.mean(t, axis=-1, keepdims=True)
        var = jnp.mean((t - m) ** 2, axis=-1, keepdims=True)
        return (t - m) * lax.rsqrt(var + EPS) * w + b

    x1 = ln(x + attn_out, n1w, n1b)
    ff = jnp.maximum(x1 @ l1w.T + l1b, 0.0) @ l2w.T + l2b
    return ln(x1 + ff, n2w, n2b)


def ref_encoder(x, layer_params):
    for p in layer_params:
        x = ref_block(x, p)
    return x


if __name__ == "__main__":
    key = jax.random.PRNGKey(0)
    kx, *kls = jax.random.split(key, 1 + NUM_LAYERS)
    x = jax.random.normal(kx, (B, S, D), jnp.float32)
    layer_params = [init_block_params(k) for k in kls]

    forward = jax.jit(transformer_encoder_pallas)
    out = jax.block_until_ready(forward(x, layer_params))

    ref = jax.block_until_ready(ref_encoder(x, layer_params))
    assert out.shape == (B, S, D)
    assert jnp.allclose(out, ref, atol=1e-3, rtol=1e-3), "mismatch vs JAX reference"

    print("KERNEL_OK")
</pallas_src>

<mosaic_0001>
module attributes {stable_mosaic.version = 11 : i64} {
  func.func @transformer_encoder_kernel(%arg0: memref<16x32xf32, #tpu.memory_space<vmem>>, %arg1: memref<16x16xf32, #tpu.memory_space<vmem>>, %arg2: memref<2x32x96xf32, #tpu.memory_space<vmem>>, %arg3: memref<2x1x96xf32, #tpu.memory_space<vmem>>, %arg4: memref<2x32x32xf32, #tpu.memory_space<vmem>>, %arg5: memref<2x1x32xf32, #tpu.memory_space<vmem>>, %arg6: memref<2x1x32xf32, #tpu.memory_space<vmem>>, %arg7: memref<2x1x32xf32, #tpu.memory_space<vmem>>, %arg8: memref<2x32x64xf32, #tpu.memory_space<vmem>>, %arg9: memref<2x1x64xf32, #tpu.memory_space<vmem>>, %arg10: memref<2x64x32xf32, #tpu.memory_space<vmem>>, %arg11: memref<2x1x32xf32, #tpu.memory_space<vmem>>, %arg12: memref<2x1x32xf32, #tpu.memory_space<vmem>>, %arg13: memref<2x1x32xf32, #tpu.memory_space<vmem>>, %arg14: memref<16x32xf32, #tpu.memory_space<vmem>>) attributes {dimension_semantics = [], scalar_prefetch = 0 : i64, scratch_operands = 0 : i64, tpu.core_type = #tpu.core_type<tc>} {
    %c0 = arith.constant 0 : index
    %c0_0 = arith.constant 0 : index
    %0 = vector.load %arg0[%c0, %c0_0] : memref<16x32xf32, #tpu.memory_space<vmem>>, vector<16x32xf32>
    %c0_1 = arith.constant 0 : index
    %c0_2 = arith.constant 0 : index
    %1 = vector.load %arg1[%c0_1, %c0_2] : memref<16x16xf32, #tpu.memory_space<vmem>>, vector<16x16xf32>
    %c0_3 = arith.constant 0 : index
    %c0_4 = arith.constant 0 : index
    %c0_5 = arith.constant 0 : index
    %2 = vector.load %arg2[%c0_3, %c0_4, %c0_5] : memref<2x32x96xf32, #tpu.memory_space<vmem>>, vector<1x32x96xf32>
    %3 = vector.shape_cast %2 : vector<1x32x96xf32> to vector<32x96xf32>
    %cst = arith.constant dense<0.000000e+00> : vector<16x96xf32>
    %4 = tpu.matmul %0, %3, %cst {dimension_numbers = #tpu.dot_dimension_numbers<[1], [0], [0], [1], [0, 0, 1, 1], [], []>} : vector<16x32xf32>, vector<32x96xf32>, vector<16x96xf32> -> vector<16x96xf32>
    %c0_6 = arith.constant 0 : index
    %c0_7 = arith.constant 0 : index
    %c0_8 = arith.constant 0 : index
    %5 = vector.load %arg3[%c0_6, %c0_7, %c0_8] : memref<2x1x96xf32, #tpu.memory_space<vmem>>, vector<1x1x96xf32>
    %6 = vector.shape_cast %5 : vector<1x1x96xf32> to vector<1x96xf32>
    %7 = vector.broadcast %6 : vector<1x96xf32> to vector<16x96xf32>
    %8 = arith.addf %4, %7 : vector<16x96xf32>
    %9 = vector.extract_strided_slice %8 {offsets = [0, 0], sizes = [16, 32], strides = [1, 1]} : vector<16x96xf32> to vector<16x32xf32>
    %10 = vector.extract_strided_slice %8 {offsets = [0, 32], sizes = [16, 32], strides = [1, 1]} : vector<16x96xf32> to vector<16x32xf32>
    %11 = vector.extract_strided_slice %8 {offsets = [0, 64], sizes = [16, 32], strides = [1, 1]} : vector<16x96xf32> to vector<16x32xf32>
    %12 = vector.extract_strided_slice %9 {offsets = [0, 0], sizes = [16, 8], strides = [1, 1]} : vector<16x32xf32> to vector<16x8xf32>
    %13 = vector.extract_strided_slice %9 {offsets = [0, 8], sizes = [16, 8], strides = [1, 1]} : vector<16x32xf32> to vector<16x8xf32>
    %14 = vector.extract_strided_slice %9 {offsets = [0, 16], sizes = [16, 8], strides = [1, 1]} : vector<16x32xf32> to vector<16x8xf32>
    %15 = vector.extract_strided_slice %9 {offsets = [0, 24], sizes = [16, 8], strides = [1, 1]} : vector<16x32xf32> to vector<16x8xf32>
    %16 = vector.shape_cast %12 : vector<16x8xf32> to vector<1x16x8xf32>
    %17 = vector.shape_cast %13 : vector<16x8xf32> to vector<1x16x8xf32>
    %18 = vector.shape_cast %14 : vector<16x8xf32> to vector<1x16x8xf32>
    %19 = vector.shape_cast %15 : vector<16x8xf32> to vector<1x16x8xf32>
    %20 = tpu.concatenate %16, %17, %18, %19 in 0 : vector<1x16x8xf32>, vector<1x16x8xf32>, vector<1x16x8xf32>, vector<1x16x8xf32> -> vector<4x16x8xf32>
    %21 = vector.extract_strided_slice %10 {offsets = [0, 0], sizes = [16, 8], strides = [1, 1]} : vector<16x32xf32> to vector<16x8xf32>
    %22 = vector.extract_strided_slice %10 {offsets = [0, 8], sizes = [16, 8], strides = [1, 1]} : vector<16x32xf32> to vector<16x8xf32>
    %23 = vector.extract_strided_slice %10 {offsets = [0, 16], sizes = [16, 8], strides = [1, 1]} : vector<16x32xf32> to vector<16x8xf32>
    %24 = vector.extract_strided_slice %10 {offsets = [0, 24], sizes = [16, 8], strides = [1, 1]} : vector<16x32xf32> to vector<16x8xf32>
    %25 = vector.shape_cast %21 : vector<16x8xf32> to vector<1x16x8xf32>
    %26 = vector.shape_cast %22 : vector<16x8xf32> to vector<1x16x8xf32>
    %27 = vector.shape_cast %23 : vector<16x8xf32> to vector<1x16x8xf32>
    %28 = vector.shape_cast %24 : vector<16x8xf32> to vector<1x16x8xf32>
    %29 = tpu.concatenate %25, %26, %27, %28 in 0 : vector<1x16x8xf32>, vector<1x16x8xf32>, vector<1x16x8xf32>, vector<1x16x8xf32> -> vector<4x16x8xf32>
    %30 = vector.extract_strided_slice %11 {offsets = [0, 0], sizes = [16, 8], strides = [1, 1]} : vector<16x32xf32> to vector<16x8xf32>
    %31 = vector.extract_strided_slice %11 {offsets = [0, 8], sizes = [16, 8], strides = [1, 1]} : vector<16x32xf32> to vector<16x8xf32>
    %32 = vector.extract_strided_slice %11 {offsets = [0, 16], sizes = [16, 8], strides = [1, 1]} : vector<16x32xf32> to vector<16x8xf32>
    %33 = vector.extract_strided_slice %11 {offsets = [0, 24], sizes = [16, 8], strides = [1, 1]} : vector<16x32xf32> to vector<16x8xf32>
    %34 = vector.shape_cast %30 : vector<16x8xf32> to vector<1x16x8xf32>
    %35 = vector.shape_cast %31 : vector<16x8xf32> to vector<1x16x8xf32>
    %36 = vector.shape_cast %32 : vector<16x8xf32> to vector<1x16x8xf32>
    %37 = vector.shape_cast %33 : vector<16x8xf32> to vector<1x16x8xf32>
    %38 = tpu.concatenate %34, %35, %36, %37 in 0 : vector<1x16x8xf32>, vector<1x16x8xf32>, vector<1x16x8xf32>, vector<1x16x8xf32> -> vector<4x16x8xf32>
    "tpu.trace_start"() <{level = 10 : i32, message = "hqd,hkd->hqk"}> : () -> ()
    %cst_9 = arith.constant dense<0.000000e+00> : vector<4x16x16xf32>
    %39 = tpu.matmul %20, %29, %cst_9 {dimension_numbers = #tpu.dot_dimension_numbers<[2], [2], [1], [1], [0, 0, 0, 1, 1, 1], [0], [0]>} : vector<4x16x8xf32>, vector<4x16x8xf32>, vector<4x16x16xf32> -> vector<4x16x16xf32>
    "tpu.trace_stop"() : () -> ()
    %40 = vector.shape_cast %1 : vector<16x16xf32> to vector<1x16x16xf32>
    %41 = vector.broadcast %40 : vector<1x16x16xf32> to vector<4x16x16xf32>
    %42 = arith.addf %39, %41 : vector<4x16x16xf32>
    %cst_10 = arith.constant dense<0xFF800000> : vector<4x16xf32>
    %43 = vector.multi_reduction <maximumf>, %42, %cst_10 [2] : vector<4x16x16xf32> to vector<4x16xf32>
    %44 = vector.shape_cast %43 : vector<4x16xf32> to vector<4x16x1xf32>
    %45 = vector.broadcast %44 : vector<4x16x1xf32> to vector<4x16x16xf32>
    %46 = arith.subf %42, %45 : vector<4x16x16xf32>
    %47 = math.exp %46 : vector<4x16x16xf32>
    %cst_11 = arith.constant dense<0.000000e+00> : vector<4x16xf32>
    %48 = vector.multi_reduction <add>, %47, %cst_11 [2] : vector<4x16x16xf32> to vector<4x16xf32>
    %49 = vector.shape_cast %48 : vector<4x16xf32> to vector<4x16x1xf32>
    %50 = tpu.reciprocal %49 {approx = true} : vector<4x16x1xf32> -> vector<4x16x1xf32>
    %51 = vector.broadcast %50 : vector<4x16x1xf32> to vector<4x16x16xf32>
    %52 = arith.mulf %47, %51 : vector<4x16x16xf32>
    "tpu.trace_start"() <{level = 10 : i32, message = "hqk,hkd->hqd"}> : () -> ()
    %cst_12 = arith.constant dense<0.000000e+00> : vector<4x16x8xf32>
    %53 = tpu.matmul %52, %38, %cst_12 {dimension_numbers = #tpu.dot_dimension_numbers<[2], [1], [1], [2], [0, 0, 0, 1, 1, 2], [0], [0]>} : vector<4x16x16xf32>, vector<4x16x8xf32>, vector<4x16x8xf32> -> vector<4x16x8xf32>
    "tpu.trace_stop"() : () -> ()
    %54 = vector.extract_strided_slice %53 {offsets = [0, 0, 0], sizes = [1, 16, 8], strides = [1, 1, 1]} : vector<4x16x8xf32> to vector<1x16x8xf32>
    %55 = vector.shape_cast %54 : vector<1x16x8xf32> to vector<16x8xf32>
    %56 = vector.extract_strided_slice %53 {offsets = [1, 0, 0], sizes = [1, 16, 8], strides = [1, 1, 1]} : vector<4x16x8xf32> to vector<1x16x8xf32>
    %57 = vector.shape_cast %56 : vector<1x16x8xf32> to vector<16x8xf32>
    %58 = vector.extract_strided_slice %53 {offsets = [2, 0, 0], sizes = [1, 16, 8], strides = [1, 1, 1]} : vector<4x16x8xf32> to vector<1x16x8xf32>
    %59 = vector.shape_cast %58 : vector<1x16x8xf32> to vector<16x8xf32>
    %60 = vector.extract_strided_slice %53 {offsets = [3, 0, 0], sizes = [1, 16, 8], strides = [1, 1, 1]} : vector<4x16x8xf32> to vector<1x16x8xf32>
    %61 = vector.shape_cast %60 : vector<1x16x8xf32> to vector<16x8xf32>
    %62 = tpu.concatenate %55, %57, %59, %61 in 1 : vector<16x8xf32>, vector<16x8xf32>, vector<16x8xf32>, vector<16x8xf32> -> vector<16x32xf32>
    %c0_13 = arith.constant 0 : index
    %c0_14 = arith.constant 0 : index
    %c0_15 = arith.constant 0 : index
    %63 = vector.load %arg4[%c0_13, %c0_14, %c0_15] : memref<2x32x32xf32, #tpu.memory_space<vmem>>, vector<1x32x32xf32>
    %64 = vector.shape_cast %63 : vector<1x32x32xf32> to vector<32x32xf32>
    %cst_16 = arith.constant dense<0.000000e+00> : vector<16x32xf32>
    %65 = tpu.matmul %62, %64, %cst_16 {dimension_numbers = #tpu.dot_dimension_numbers<[1], [0], [0], [1], [0, 0, 1, 1], [], []>} : vector<16x32xf32>, vector<32x32xf32>, vector<16x32xf32> -> vector<16x32xf32>
    %c0_17 = arith.constant 0 : index
    %c0_18 = arith.constant 0 : index
    %c0_19 = arith.constant 0 : index
    %66 = vector.load %arg5[%c0_17, %c0_18, %c0_19] : memref<2x1x32xf32, #tpu.memory_space<vmem>>, vector<1x1x32xf32>
    %67 = vector.shape_cast %66 : vector<1x1x32xf32> to vector<1x32xf32>
    %68 = vector.broadcast %67 : vector<1x32xf32> to vector<16x32xf32>
    %69 = arith.addf %65, %68 : vector<16x32xf32>
    %70 = arith.addf %0, %69 : vector<16x32xf32>
    %c0_20 = arith.constant 0 : index
    %c0_21 = arith.constant 0 : index
    %c0_22 = arith.constant 0 : index
    %71 = vector.load %arg6[%c0_20, %c0_21, %c0_22] : memref<2x1x32xf32, #tpu.memory_space<vmem>>, vector<1x1x32xf32>
    %72 = vector.shape_cast %71 : vector<1x1x32xf32> to vector<1x32xf32>
    %c0_23 = arith.constant 0 : index
    %c0_24 = arith.constant 0 : index
    %c0_25 = arith.constant 0 : index
    %73 = vector.load %arg7[%c0_23, %c0_24, %c0_25] : memref<2x1x32xf32, #tpu.memory_space<vmem>>, vector<1x1x32xf32>
    %74 = vector.shape_cast %73 : vector<1x1x32xf32> to vector<1x32xf32>
    %cst_26 = arith.constant dense<0.000000e+00> : vector<16xf32>
    %75 = vector.multi_reduction <add>, %70, %cst_26 [1] : vector<16x32xf32> to vector<16xf32>
    %76 = vector.shape_cast %75 : vector<16xf32> to vector<16x1xf32>
    %cst_27 = arith.constant 3.200000e+01 : f32
    %77 = vector.broadcast %cst_27 : f32 to vector<16x1xf32>
    %78 = arith.divf %76, %77 : vector<16x1xf32>
    %79 = vector.broadcast %78 : vector<16x1xf32> to vector<16x32xf32>
    %80 = arith.subf %70, %79 : vector<16x32xf32>
    %81 = arith.mulf %80, %80 : vector<16x32xf32>
    %cst_28 = arith.constant dense<0.000000e+00> : vector<16xf32>
    %82 = vector.multi_reduction <add>, %81, %cst_28 [1] : vector<16x32xf32> to vector<16xf32>
    %83 = vector.shape_cast %82 : vector<16xf32> to vector<16x1xf32>
    %cst_29 = arith.constant 3.200000e+01 : f32
    %84 = vector.broadcast %cst_29 : f32 to vector<16x1xf32>
    %85 = arith.divf %83, %84 : vector<16x1xf32>
    %86 = vector.broadcast %78 : vector<16x1xf32> to vector<16x32xf32>
    %87 = arith.subf %70, %86 : vector<16x32xf32>
    %cst_30 = arith.constant 9.99999974E-6 : f32
    %88 = vector.broadcast %cst_30 : f32 to vector<16x1xf32>
    %89 = arith.addf %85, %88 : vector<16x1xf32>
    %90 = math.rsqrt %89 : vector<16x1xf32>
    %91 = vector.broadcast %90 : vector<16x1xf32> to vector<16x32xf32>
    %92 = arith.mulf %87, %91 : vector<16x32xf32>
    %93 = vector.broadcast %72 : vector<1x32xf32> to vector<16x32xf32>
    %94 = arith.mulf %92, %93 : vector<16x32xf32>
    %95 = vector.broadcast %74 : vector<1x32xf32> to vector<16x32xf32>
    %96 = arith.addf %94, %95 : vector<16x32xf32>
    %c0_31 = arith.constant 0 : index
    %c0_32 = arith.constant 0 : index
    %c0_33 = arith.constant 0 : index
    %97 = vector.load %arg8[%c0_31, %c0_32, %c0_33] : memref<2x32x64xf32, #tpu.memory_space<vmem>>, vector<1x32x64xf32>
    %98 = vector.shape_cast %97 : vector<1x32x64xf32> to vector<32x64xf32>
    %cst_34 = arith.constant dense<0.000000e+00> : vector<16x64xf32>
    %99 = tpu.matmul %96, %98, %cst_34 {dimension_numbers = #tpu.dot_dimension_numbers<[1], [0], [0], [1], [0, 0, 1, 1], [], []>} : vector<16x32xf32>, vector<32x64xf32>, vector<16x64xf32> -> vector<16x64xf32>
    %c0_35 = arith.constant 0 : index
    %c0_36 = arith.constant 0 : index
    %c0_37 = arith.constant 0 : index
    %100 = vector.load %arg9[%c0_35, %c0_36, %c0_37] : memref<2x1x64xf32, #tpu.memory_space<vmem>>, vector<1x1x64xf32>
    %101 = vector.shape_cast %100 : vector<1x1x64xf32> to vector<1x64xf32>
    %102 = vector.broadcast %101 : vector<1x64xf32> to vector<16x64xf32>
    %103 = arith.addf %99, %102 : vector<16x64xf32>
    %cst_38 = arith.constant 0.000000e+00 : f32
    %104 = vector.broadcast %cst_38 : f32 to vector<16x64xf32>
    %105 = arith.maximumf %103, %104 : vector<16x64xf32>
    %c0_39 = arith.constant 0 : index
    %c0_40 = arith.constant 0 : index
    %c0_41 = arith.constant 0 : index
    %106 = vector.load %arg10[%c0_39, %c0_40, %c0_41] : memref<2x64x32xf32, #tpu.memory_space<vmem>>, vector<1x64x32xf32>
    %107 = vector.shape_cast %106 : vector<1x64x32xf32> to vector<64x32xf32>
    %cst_42 = arith.constant dense<0.000000e+00> : vector<16x32xf32>
    %108 = tpu.matmul %105, %107, %cst_42 {dimension_numbers = #tpu.dot_dimension_numbers<[1], [0], [0], [1], [0, 0, 1, 1], [], []>} : vector<16x64xf32>, vector<64x32xf32>, vector<16x32xf32> -> vector<16x32xf32>
    %c0_43 = arith.constant 0 : index
    %c0_44 = arith.constant 0 : index
    %c0_45 = arith.constant 0 : index
    %109 = vector.load %arg11[%c0_43, %c0_44, %c0_45] : memref<2x1x32xf32, #tpu.memory_space<vmem>>, vector<1x1x32xf32>
    %110 = vector.shape_cast %109 : vector<1x1x32xf32> to vector<1x32xf32>
    %111 = vector.broadcast %110 : vector<1x32xf32> to vector<16x32xf32>
    %112 = arith.addf %108, %111 : vector<16x32xf32>
    %113 = arith.addf %96, %112 : vector<16x32xf32>
    %c0_46 = arith.constant 0 : index
    %c0_47 = arith.constant 0 : index
    %c0_48 = arith.constant 0 : index
    %114 = vector.load %arg12[%c0_46, %c0_47, %c0_48] : memref<2x1x32xf32, #tpu.memory_space<vmem>>, vector<1x1x32xf32>
    %115 = vector.shape_cast %114 : vector<1x1x32xf32> to vector<1x32xf32>
    %c0_49 = arith.constant 0 : index
    %c0_50 = arith.constant 0 : index
    %c0_51 = arith.constant 0 : index
    %116 = vector.load %arg13[%c0_49, %c0_50, %c0_51] : memref<2x1x32xf32, #tpu.memory_space<vmem>>, vector<1x1x32xf32>
    %117 = vector.shape_cast %116 : vector<1x1x32xf32> to vector<1x32xf32>
    %cst_52 = arith.constant dense<0.000000e+00> : vector<16xf32>
    %118 = vector.multi_reduction <add>, %113, %cst_52 [1] : vector<16x32xf32> to vector<16xf32>
    %119 = vector.shape_cast %118 : vector<16xf32> to vector<16x1xf32>
    %cst_53 = arith.constant 3.200000e+01 : f32
    %120 = vector.broadcast %cst_53 : f32 to vector<16x1xf32>
    %121 = arith.divf %119, %120 : vector<16x1xf32>
    %122 = vector.broadcast %121 : vector<16x1xf32> to vector<16x32xf32>
    %123 = arith.subf %113, %122 : vector<16x32xf32>
    %124 = arith.mulf %123, %123 : vector<16x32xf32>
    %cst_54 = arith.constant dense<0.000000e+00> : vector<16xf32>
    %125 = vector.multi_reduction <add>, %124, %cst_54 [1] : vector<16x32xf32> to vector<16xf32>
    %126 = vector.shape_cast %125 : vector<16xf32> to vector<16x1xf32>
    %cst_55 = arith.constant 3.200000e+01 : f32
    %127 = vector.broadcast %cst_55 : f32 to vector<16x1xf32>
    %128 = arith.divf %126, %127 : vector<16x1xf32>
    %129 = vector.broadcast %121 : vector<16x1xf32> to vector<16x32xf32>
    %130 = arith.subf %113, %129 : vector<16x32xf32>
    %cst_56 = arith.constant 9.99999974E-6 : f32
    %131 = vector.broadcast %cst_56 : f32 to vector<16x1xf32>
    %132 = arith.addf %128, %131 : vector<16x1xf32>
    %133 = math.rsqrt %132 : vector<16x1xf32>
    %134 = vector.broadcast %133 : vector<16x1xf32> to vector<16x32xf32>
    %135 = arith.mulf %130, %134 : vector<16x32xf32>
    %136 = vector.broadcast %115 : vector<1x32xf32> to vector<16x32xf32>
    %137 = arith.mulf %135, %136 : vector<16x32xf32>
    %138 = vector.broadcast %117 : vector<1x32xf32> to vector<16x32xf32>
    %139 = arith.addf %137, %138 : vector<16x32xf32>
    %c1 = arith.constant 1 : index
    %c0_57 = arith.constant 0 : index
    %c0_58 = arith.constant 0 : index
    %140 = vector.load %arg2[%c1, %c0_57, %c0_58] : memref<2x32x96xf32, #tpu.memory_space<vmem>>, vector<1x32x96xf32>
    %141 = vector.shape_cast %140 : vector<1x32x96xf32> to vector<32x96xf32>
    %cst_59 = arith.constant dense<0.000000e+00> : vector<16x96xf32>
    %142 = tpu.matmul %139, %141, %cst_59 {dimension_numbers = #tpu.dot_dimension_numbers<[1], [0], [0], [1], [0, 0, 1, 1], [], []>} : vector<16x32xf32>, vector<32x96xf32>, vector<16x96xf32> -> vector<16x96xf32>
    %c1_60 = arith.constant 1 : index
    %c0_61 = arith.constant 0 : index
    %c0_62 = arith.constant 0 : index
    %143 = vector.load %arg3[%c1_60, %c0_61, %c0_62] : memref<2x1x96xf32, #tpu.memory_space<vmem>>, vector<1x1x96xf32>
    %144 = vector.shape_cast %143 : vector<1x1x96xf32> to vector<1x96xf32>
    %145 = vector.broadcast %144 : vector<1x96xf32> to vector<16x96xf32>
    %146 = arith.addf %142, %145 : vector<16x96xf32>
    %147 = vector.extract_strided_slice %146 {offsets = [0, 0], sizes = [16, 32], strides = [1, 1]} : vector<16x96xf32> to vector<16x32xf32>
    %148 = vector.extract_strided_slice %146 {offsets = [0, 32], sizes = [16, 32], strides = [1, 1]} : vector<16x96xf32> to vector<16x32xf32>
    %149 = vector.extract_strided_slice %146 {offsets = [0, 64], sizes = [16, 32], strides = [1, 1]} : vector<16x96xf32> to vector<16x32xf32>
    %150 = vector.extract_strided_slice %147 {offsets = [0, 0], sizes = [16, 8], strides = [1, 1]} : vector<16x32xf32> to vector<16x8xf32>
    %151 = vector.extract_strided_slice %147 {offsets = [0, 8], sizes = [16, 8], strides = [1, 1]} : vector<16x32xf32> to vector<16x8xf32>
    %152 = vector.extract_strided_slice %147 {offsets = [0, 16], sizes = [16, 8], strides = [1, 1]} : vector<16x32xf32> to vector<16x8xf32>
    %153 = vector.extract_strided_slice %147 {offsets = [0, 24], sizes = [16, 8], strides = [1, 1]} : vector<16x32xf32> to vector<16x8xf32>
    %154 = vector.shape_cast %150 : vector<16x8xf32> to vector<1x16x8xf32>
    %155 = vector.shape_cast %151 : vector<16x8xf32> to vector<1x16x8xf32>
    %156 = vector.shape_cast %152 : vector<16x8xf32> to vector<1x16x8xf32>
    %157 = vector.shape_cast %153 : vector<16x8xf32> to vector<1x16x8xf32>
    %158 = tpu.concatenate %154, %155, %156, %157 in 0 : vector<1x16x8xf32>, vector<1x16x8xf32>, vector<1x16x8xf32>, vector<1x16x8xf32> -> vector<4x16x8xf32>
    %159 = vector.extract_strided_slice %148 {offsets = [0, 0], sizes = [16, 8], strides = [1, 1]} : vector<16x32xf32> to vector<16x8xf32>
    %160 = vector.extract_strided_slice %148 {offsets = [0, 8], sizes = [16, 8], strides = [1, 1]} : vector<16x32xf32> to vector<16x8xf32>
    %161 = vector.extract_strided_slice %148 {offsets = [0, 16], sizes = [16, 8], strides = [1, 1]} : vector<16x32xf32> to vector<16x8xf32>
    %162 = vector.extract_strided_slice %148 {offsets = [0, 24], sizes = [16, 8], strides = [1, 1]} : vector<16x32xf32> to vector<16x8xf32>
    %163 = vector.shape_cast %159 : vector<16x8xf32> to vector<1x16x8xf32>
    %164 = vector.shape_cast %160 : vector<16x8xf32> to vector<1x16x8xf32>
    %165 = vector.shape_cast %161 : vector<16x8xf32> to vector<1x16x8xf32>
    %166 = vector.shape_cast %162 : vector<16x8xf32> to vector<1x16x8xf32>
    %167 = tpu.concatenate %163, %164, %165, %166 in 0 : vector<1x16x8xf32>, vector<1x16x8xf32>, vector<1x16x8xf32>, vector<1x16x8xf32> -> vector<4x16x8xf32>
    %168 = vector.extract_strided_slice %149 {offsets = [0, 0], sizes = [16, 8], strides = [1, 1]} : vector<16x32xf32> to vector<16x8xf32>
    %169 = vector.extract_strided_slice %149 {offsets = [0, 8], sizes = [16, 8], strides = [1, 1]} : vector<16x32xf32> to vector<16x8xf32>
    %170 = vector.extract_strided_slice %149 {offsets = [0, 16], sizes = [16, 8], strides = [1, 1]} : vector<16x32xf32> to vector<16x8xf32>
    %171 = vector.extract_strided_slice %149 {offsets = [0, 24], sizes = [16, 8], strides = [1, 1]} : vector<16x32xf32> to vector<16x8xf32>
    %172 = vector.shape_cast %168 : vector<16x8xf32> to vector<1x16x8xf32>
    %173 = vector.shape_cast %169 : vector<16x8xf32> to vector<1x16x8xf32>
    %174 = vector.shape_cast %170 : vector<16x8xf32> to vector<1x16x8xf32>
    %175 = vector.shape_cast %171 : vector<16x8xf32> to vector<1x16x8xf32>
    %176 = tpu.concatenate %172, %173, %174, %175 in 0 : vector<1x16x8xf32>, vector<1x16x8xf32>, vector<1x16x8xf32>, vector<1x16x8xf32> -> vector<4x16x8xf32>
    "tpu.trace_start"() <{level = 10 : i32, message = "hqd,hkd->hqk"}> : () -> ()
    %cst_63 = arith.constant dense<0.000000e+00> : vector<4x16x16xf32>
    %177 = tpu.matmul %158, %167, %cst_63 {dimension_numbers = #tpu.dot_dimension_numbers<[2], [2], [1], [1], [0, 0, 0, 1, 1, 1], [0], [0]>} : vector<4x16x8xf32>, vector<4x16x8xf32>, vector<4x16x16xf32> -> vector<4x16x16xf32>
    "tpu.trace_stop"() : () -> ()
    %178 = vector.shape_cast %1 : vector<16x16xf32> to vector<1x16x16xf32>
    %179 = vector.broadcast %178 : vector<1x16x16xf32> to vector<4x16x16xf32>
    %180 = arith.addf %177, %179 : vector<4x16x16xf32>
    %cst_64 = arith.constant dense<0xFF800000> : vector<4x16xf32>
    %181 = vector.multi_reduction <maximumf>, %180, %cst_64 [2] : vector<4x16x16xf32> to vector<4x16xf32>
    %182 = vector.shape_cast %181 : vector<4x16xf32> to vector<4x16x1xf32>
    %183 = vector.broadcast %182 : vector<4x16x1xf32> to vector<4x16x16xf32>
    %184 = arith.subf %180, %183 : vector<4x16x16xf32>
    %185 = math.exp %184 : vector<4x16x16xf32>
    %cst_65 = arith.constant dense<0.000000e+00> : vector<4x16xf32>
    %186 = vector.multi_reduction <add>, %185, %cst_65 [2] : vector<4x16x16xf32> to vector<4x16xf32>
    %187 = vector.shape_cast %186 : vector<4x16xf32> to vector<4x16x1xf32>
    %188 = tpu.reciprocal %187 {approx = true} : vector<4x16x1xf32> -> vector<4x16x1xf32>
    %189 = vector.broadcast %188 : vector<4x16x1xf32> to vector<4x16x16xf32>
    %190 = arith.mulf %185, %189 : vector<4x16x16xf32>
    "tpu.trace_start"() <{level = 10 : i32, message = "hqk,hkd->hqd"}> : () -> ()
    %cst_66 = arith.constant dense<0.000000e+00> : vector<4x16x8xf32>
    %191 = tpu.matmul %190, %176, %cst_66 {dimension_numbers = #tpu.dot_dimension_numbers<[2], [1], [1], [2], [0, 0, 0, 1, 1, 2], [0], [0]>} : vector<4x16x16xf32>, vector<4x16x8xf32>, vector<4x16x8xf32> -> vector<4x16x8xf32>
    "tpu.trace_stop"() : () -> ()
    %192 = vector.extract_strided_slice %191 {offsets = [0, 0, 0], sizes = [1, 16, 8], strides = [1, 1, 1]} : vector<4x16x8xf32> to vector<1x16x8xf32>
    %193 = vector.shape_cast %192 : vector<1x16x8xf32> to vector<16x8xf32>
    %194 = vector.extract_strided_slice %191 {offsets = [1, 0, 0], sizes = [1, 16, 8], strides = [1, 1, 1]} : vector<4x16x8xf32> to vector<1x16x8xf32>
    %195 = vector.shape_cast %194 : vector<1x16x8xf32> to vector<16x8xf32>
    %196 = vector.extract_strided_slice %191 {offsets = [2, 0, 0], sizes = [1, 16, 8], strides = [1, 1, 1]} : vector<4x16x8xf32> to vector<1x16x8xf32>
    %197 = vector.shape_cast %196 : vector<1x16x8xf32> to vector<16x8xf32>
    %198 = vector.extract_strided_slice %191 {offsets = [3, 0, 0], sizes = [1, 16, 8], strides = [1, 1, 1]} : vector<4x16x8xf32> to vector<1x16x8xf32>
    %199 = vector.shape_cast %198 : vector<1x16x8xf32> to vector<16x8xf32>
    %200 = tpu.concatenate %193, %195, %197, %199 in 1 : vector<16x8xf32>, vector<16x8xf32>, vector<16x8xf32>, vector<16x8xf32> -> vector<16x32xf32>
    %c1_67 = arith.constant 1 : index
    %c0_68 = arith.constant 0 : index
    %c0_69 = arith.constant 0 : index
    %201 = vector.load %arg4[%c1_67, %c0_68, %c0_69] : memref<2x32x32xf32, #tpu.memory_space<vmem>>, vector<1x32x32xf32>
    %202 = vector.shape_cast %201 : vector<1x32x32xf32> to vector<32x32xf32>
    %cst_70 = arith.constant dense<0.000000e+00> : vector<16x32xf32>
    %203 = tpu.matmul %200, %202, %cst_70 {dimension_numbers = #tpu.dot_dimension_numbers<[1], [0], [0], [1], [0, 0, 1, 1], [], []>} : vector<16x32xf32>, vector<32x32xf32>, vector<16x32xf32> -> vector<16x32xf32>
    %c1_71 = arith.constant 1 : index
    %c0_72 = arith.constant 0 : index
    %c0_73 = arith.constant 0 : index
    %204 = vector.load %arg5[%c1_71, %c0_72, %c0_73] : memref<2x1x32xf32, #tpu.memory_space<vmem>>, vector<1x1x32xf32>
    %205 = vector.shape_cast %204 : vector<1x1x32xf32> to vector<1x32xf32>
    %206 = vector.broadcast %205 : vector<1x32xf32> to vector<16x32xf32>
    %207 = arith.addf %203, %206 : vector<16x32xf32>
    %208 = arith.addf %139, %207 : vector<16x32xf32>
    %c1_74 = arith.constant 1 : index
    %c0_75 = arith.constant 0 : index
    %c0_76 = arith.constant 0 : index
    %209 = vector.load %arg6[%c1_74, %c0_75, %c0_76] : memref<2x1x32xf32, #tpu.memory_space<vmem>>, vector<1x1x32xf32>
    %210 = vector.shape_cast %209 : vector<1x1x32xf32> to vector<1x32xf32>
    %c1_77 = arith.constant 1 : index
    %c0_78 = arith.constant 0 : index
    %c0_79 = arith.constant 0 : index
    %211 = vector.load %arg7[%c1_77, %c0_78, %c0_79] : memref<2x1x32xf32, #tpu.memory_space<vmem>>, vector<1x1x32xf32>
    %212 = vector.shape_cast %211 : vector<1x1x32xf32> to vector<1x32xf32>
    %cst_80 = arith.constant dense<0.000000e+00> : vector<16xf32>
    %213 = vector.multi_reduction <add>, %208, %cst_80 [1] : vector<16x32xf32> to vector<16xf32>
    %214 = vector.shape_cast %213 : vector<16xf32> to vector<16x1xf32>
    %cst_81 = arith.constant 3.200000e+01 : f32
    %215 = vector.broadcast %cst_81 : f32 to vector<16x1xf32>
    %216 = arith.divf %214, %215 : vector<16x1xf32>
    %217 = vector.broadcast %216 : vector<16x1xf32> to vector<16x32xf32>
    %218 = arith.subf %208, %217 : vector<16x32xf32>
    %219 = arith.mulf %218, %218 : vector<16x32xf32>
    %cst_82 = arith.constant dense<0.000000e+00> : vector<16xf32>
    %220 = vector.multi_reduction <add>, %219, %cst_82 [1] : vector<16x32xf32> to vector<16xf32>
    %221 = vector.shape_cast %220 : vector<16xf32> to vector<16x1xf32>
    %cst_83 = arith.constant 3.200000e+01 : f32
    %222 = vector.broadcast %cst_83 : f32 to vector<16x1xf32>
    %223 = arith.divf %221, %222 : vector<16x1xf32>
    %224 = vector.broadcast %216 : vector<16x1xf32> to vector<16x32xf32>
    %225 = arith.subf %208, %224 : vector<16x32xf32>
    %cst_84 = arith.constant 9.99999974E-6 : f32
    %226 = vector.broadcast %cst_84 : f32 to vector<16x1xf32>
    %227 = arith.addf %223, %226 : vector<16x1xf32>
    %228 = math.rsqrt %227 : vector<16x1xf32>
    %229 = vector.broadcast %228 : vector<16x1xf32> to vector<16x32xf32>
    %230 = arith.mulf %225, %229 : vector<16x32xf32>
    %231 = vector.broadcast %210 : vector<1x32xf32> to vector<16x32xf32>
    %232 = arith.mulf %230, %231 : vector<16x32xf32>
    %233 = vector.broadcast %212 : vector<1x32xf32> to vector<16x32xf32>
    %234 = arith.addf %232, %233 : vector<16x32xf32>
    %c1_85 = arith.constant 1 : index
    %c0_86 = arith.constant 0 : index
    %c0_87 = arith.constant 0 : index
    %235 = vector.load %arg8[%c1_85, %c0_86, %c0_87] : memref<2x32x64xf32, #tpu.memory_space<vmem>>, vector<1x32x64xf32>
    %236 = vector.shape_cast %235 : vector<1x32x64xf32> to vector<32x64xf32>
    %cst_88 = arith.constant dense<0.000000e+00> : vector<16x64xf32>
    %237 = tpu.matmul %234, %236, %cst_88 {dimension_numbers = #tpu.dot_dimension_numbers<[1], [0], [0], [1], [0, 0, 1, 1], [], []>} : vector<16x32xf32>, vector<32x64xf32>, vector<16x64xf32> -> vector<16x64xf32>
    %c1_89 = arith.constant 1 : index
    %c0_90 = arith.constant 0 : index
    %c0_91 = arith.constant 0 : index
    %238 = vector.load %arg9[%c1_89, %c0_90, %c0_91] : memref<2x1x64xf32, #tpu.memory_space<vmem>>, vector<1x1x64xf32>
    %239 = vector.shape_cast %238 : vector<1x1x64xf32> to vector<1x64xf32>
    %240 = vector.broadcast %239 : vector<1x64xf32> to vector<16x64xf32>
    %241 = arith.addf %237, %240 : vector<16x64xf32>
    %cst_92 = arith.constant 0.000000e+00 : f32
    %242 = vector.broadcast %cst_92 : f32 to vector<16x64xf32>
    %243 = arith.maximumf %241, %242 : vector<16x64xf32>
    %c1_93 = arith.constant 1 : index
    %c0_94 = arith.constant 0 : index
    %c0_95 = arith.constant 0 : index
    %244 = vector.load %arg10[%c1_93, %c0_94, %c0_95] : memref<2x64x32xf32, #tpu.memory_space<vmem>>, vector<1x64x32xf32>
    %245 = vector.shape_cast %244 : vector<1x64x32xf32> to vector<64x32xf32>
    %cst_96 = arith.constant dense<0.000000e+00> : vector<16x32xf32>
    %246 = tpu.matmul %243, %245, %cst_96 {dimension_numbers = #tpu.dot_dimension_numbers<[1], [0], [0], [1], [0, 0, 1, 1], [], []>} : vector<16x64xf32>, vector<64x32xf32>, vector<16x32xf32> -> vector<16x32xf32>
    %c1_97 = arith.constant 1 : index
    %c0_98 = arith.constant 0 : index
    %c0_99 = arith.constant 0 : index
    %247 = vector.load %arg11[%c1_97, %c0_98, %c0_99] : memref<2x1x32xf32, #tpu.memory_space<vmem>>, vector<1x1x32xf32>
    %248 = vector.shape_cast %247 : vector<1x1x32xf32> to vector<1x32xf32>
    %249 = vector.broadcast %248 : vector<1x32xf32> to vector<16x32xf32>
    %250 = arith.addf %246, %249 : vector<16x32xf32>
    %251 = arith.addf %234, %250 : vector<16x32xf32>
    %c1_100 = arith.constant 1 : index
    %c0_101 = arith.constant 0 : index
    %c0_102 = arith.constant 0 : index
    %252 = vector.load %arg12[%c1_100, %c0_101, %c0_102] : memref<2x1x32xf32, #tpu.memory_space<vmem>>, vector<1x1x32xf32>
    %253 = vector.shape_cast %252 : vector<1x1x32xf32> to vector<1x32xf32>
    %c1_103 = arith.constant 1 : index
    %c0_104 = arith.constant 0 : index
    %c0_105 = arith.constant 0 : index
    %254 = vector.load %arg13[%c1_103, %c0_104, %c0_105] : memref<2x1x32xf32, #tpu.memory_space<vmem>>, vector<1x1x32xf32>
    %255 = vector.shape_cast %254 : vector<1x1x32xf32> to vector<1x32xf32>
    %cst_106 = arith.constant dense<0.000000e+00> : vector<16xf32>
    %256 = vector.multi_reduction <add>, %251, %cst_106 [1] : vector<16x32xf32> to vector<16xf32>
    %257 = vector.shape_cast %256 : vector<16xf32> to vector<16x1xf32>
    %cst_107 = arith.constant 3.200000e+01 : f32
    %258 = vector.broadcast %cst_107 : f32 to vector<16x1xf32>
    %259 = arith.divf %257, %258 : vector<16x1xf32>
    %260 = vector.broadcast %259 : vector<16x1xf32> to vector<16x32xf32>
    %261 = arith.subf %251, %260 : vector<16x32xf32>
    %262 = arith.mulf %261, %261 : vector<16x32xf32>
    %cst_108 = arith.constant dense<0.000000e+00> : vector<16xf32>
    %263 = vector.multi_reduction <add>, %262, %cst_108 [1] : vector<16x32xf32> to vector<16xf32>
    %264 = vector.shape_cast %263 : vector<16xf32> to vector<16x1xf32>
    %cst_109 = arith.constant 3.200000e+01 : f32
    %265 = vector.broadcast %cst_109 : f32 to vector<16x1xf32>
    %266 = arith.divf %264, %265 : vector<16x1xf32>
    %267 = vector.broadcast %259 : vector<16x1xf32> to vector<16x32xf32>
    %268 = arith.subf %251, %267 : vector<16x32xf32>
    %cst_110 = arith.constant 9.99999974E-6 : f32
    %269 = vector.broadcast %cst_110 : f32 to vector<16x1xf32>
    %270 = arith.addf %266, %269 : vector<16x1xf32>
    %271 = math.rsqrt %270 : vector<16x1xf32>
    %272 = vector.broadcast %271 : vector<16x1xf32> to vector<16x32xf32>
    %273 = arith.mulf %268, %272 : vector<16x32xf32>
    %274 = vector.broadcast %253 : vector<1x32xf32> to vector<16x32xf32>
    %275 = arith.mulf %273, %274 : vector<16x32xf32>
    %276 = vector.broadcast %255 : vector<1x32xf32> to vector<16x32xf32>
    %277 = arith.addf %275, %276 : vector<16x32xf32>
    %c0_111 = arith.constant 0 : index
    %c0_112 = arith.constant 0 : index
    %278 = vector.load %arg14[%c0_111, %c0_112] : memref<16x32xf32, #tpu.memory_space<vmem>>, vector<16x32xf32>
    tpu.vector_store %arg14[%c0_111, %c0_112], %277 {strides = array<i32>} : memref<16x32xf32, #tpu.memory_space<vmem>>, vector<16x32xf32>,
    return
  }
}

</mosaic_0001>

<llo_original>
// kernel: transformer_encoder_pallas.1
$region0: #{transformer_encoder_pallas.1}
  #allocation0 [shape = 'u32[]', space=smem, size = 0x4, offset = 0x4, fixed_abs, tag = 'smem constant byte address 0x4 - core index']
  #allocation1 [shape = 'u32[72,128]{1,0:T(1,128)}', space=vmem, size = 0x9000, scoped, tag = 'internal scratch']
  %s0 = inlined_call_operand.vmem [shape: f32[16,32], index: 0, kind: input, shape index: {}]
  %s1 = inlined_call_operand.vmem [shape: f32[16,16], index: 1, kind: input, shape index: {}]
  %s2 = inlined_call_operand.vmem [shape: f32[2,32,96], index: 2, kind: input, shape index: {}]
  %s3 = inlined_call_operand.vmem [shape: f32[2,1,96], index: 3, kind: input, shape index: {}]
  %s4 = inlined_call_operand.vmem [shape: f32[2,32,32], index: 4, kind: input, shape index: {}]
  %s5 = inlined_call_operand.vmem [shape: f32[2,1,32], index: 5, kind: input, shape index: {}]
  %s6 = inlined_call_operand.vmem [shape: f32[2,1,32], index: 6, kind: input, shape index: {}]
  %s7 = inlined_call_operand.vmem [shape: f32[2,1,32], index: 7, kind: input, shape index: {}]
  %s8 = inlined_call_operand.vmem [shape: f32[2,32,64], index: 8, kind: input, shape index: {}]
  %s9 = inlined_call_operand.vmem [shape: f32[2,1,64], index: 9, kind: input, shape index: {}]
  %s10 = inlined_call_operand.vmem [shape: f32[2,64,32], index: 10, kind: input, shape index: {}]
  %s11 = inlined_call_operand.vmem [shape: f32[2,1,32], index: 11, kind: input, shape index: {}]
  %s12 = inlined_call_operand.vmem [shape: f32[2,1,32], index: 12, kind: input, shape index: {}]
  %s13 = inlined_call_operand.vmem [shape: f32[2,1,32], index: 13, kind: input, shape index: {}]
  %s14 = inlined_call_operand.hbm [shape: f32[16,32], index: 14, kind: output, shape index: {}]
  %s15 = sld [smem:[#allocation0]]
  $region66: #{transformer_encoder_pallas.1} parent=0
    _
  %s17 = ssub.s32 1, %s15
  %s18 = scalar_select 0, %s17, %s15
  $region1: #{transformer_encoder_pallas.1} parent=0
    #allocation2 [shape = 'u8[8192]{0}', space=vmem, size = 0x2000, scoped, tag = 'output window, operand 0, single buffered']
    #allocation3 [shape = 's32[1]{0}', space=sflag, size = 0x4, scoped, tag = 'scoped memory for transformer_encoder_pallas.1']
    %19 = vsyncpa [#allocation3], 0
    // Predicated region
    $region2: #{transformer_encoder_pallas.1} parent=1 // pred_check
      _
    $region3: #{transformer_encoder_pallas.1} parent=1 // pred_check_branch
      %21 = sbr.rel (0) target = $region5
    $region4: #{transformer_encoder_pallas.1} parent=1 // pred_region
      _
    $region5: #{transformer_encoder_pallas.1} parent=1 // pred_fallthru
      _
    // Predicated region
    $region6: #{transformer_encoder_pallas.1} parent=1 // pred_check
      _
    $region7: #{transformer_encoder_pallas.1} parent=1 // pred_check_branch
      %23 = sbr.rel (0) target = $region9
    $region8: #{transformer_encoder_pallas.1} parent=1 // pred_region
      _
    $region9: #{transformer_encoder_pallas.1} parent=1 // pred_fallthru
      _
    // Predicated region
    $region10: #{transformer_encoder_pallas.1} parent=1 // pred_check
      _
    $region11: #{transformer_encoder_pallas.1} parent=1 // pred_check_branch
      %25 = sbr.rel (0) target = $region13
    $region12: #{transformer_encoder_pallas.1} parent=1 // pred_region
      _
    $region13: #{transformer_encoder_pallas.1} parent=1 // pred_fallthru
      _
    // Predicated region
    $region14: #{transformer_encoder_pallas.1} parent=1 // pred_check
      _
    $region15: #{transformer_encoder_pallas.1} parent=1 // pred_check_branch
      %27 = sbr.rel (0) target = $region17
    $region16: #{transformer_encoder_pallas.1} parent=1 // pred_region
      _
    $region17: #{transformer_encoder_pallas.1} parent=1 // pred_fallthru
      _
    // Predicated region
    $region18: #{transformer_encoder_pallas.1} parent=1 // pred_check
      _
    $region19: #{transformer_encoder_pallas.1} parent=1 // pred_check_branch
      %29 = sbr.rel (0) target = $region21
    $region20: #{transformer_encoder_pallas.1} parent=1 // pred_region
      _
    $region21: #{transformer_encoder_pallas.1} parent=1 // pred_fallthru
      _
    // Predicated region
    $region22: #{transformer_encoder_pallas.1} parent=1 // pred_check
      _
    $region23: #{transformer_encoder_pallas.1} parent=1 // pred_check_branch
      %31 = sbr.rel (0) target = $region25
    $region24: #{transformer_encoder_pallas.1} parent=1 // pred_region
      _
    $region25: #{transformer_encoder_pallas.1} parent=1 // pred_fallthru
      _
    // Predicated region
    $region26: #{transformer_encoder_pallas.1} parent=1 // pred_check
      _
    $region27: #{transformer_encoder_pallas.1} parent=1 // pred_check_branch
      %33 = sbr.rel (0) target = $region29
    $region28: #{transformer_encoder_pallas.1} parent=1 // pred_region
      _
    $region29: #{transformer_encoder_pallas.1} parent=1 // pred_fallthru
      _
    // Predicated region
    $region30: #{transformer_encoder_pallas.1} parent=1 // pred_check
      _
    $region31: #{transformer_encoder_pallas.1} parent=1 // pred_check_branch
      %35 = sbr.rel (0) target = $region33
    $region32: #{transformer_encoder_pallas.1} parent=1 // pred_region
      _
    $region33: #{transformer_encoder_pallas.1} parent=1 // pred_fallthru
      _
    // Predicated region
    $region34: #{transformer_encoder_pallas.1} parent=1 // pred_check
      _
    $region35: #{transformer_encoder_pallas.1} parent=1 // pred_check_branch
      %37 = sbr.rel (0) target = $region37
    $region36: #{transformer_encoder_pallas.1} parent=1 // pred_region
      _
    $region37: #{transformer_encoder_pallas.1} parent=1 // pred_fallthru
      _
    // Predicated region
    $region38: #{transformer_encoder_pallas.1} parent=1 // pred_check
      _
    $region39: #{transformer_encoder_pallas.1} parent=1 // pred_check_branch
      %39 = sbr.rel (0) target = $region41
    $region40: #{transformer_encoder_pallas.1} parent=1 // pred_region
      _
    $region41: #{transformer_encoder_pallas.1} parent=1 // pred_fallthru
      _
    // Predicated region
    $region42: #{transformer_encoder_pallas.1} parent=1 // pred_check
      _
    $region43: #{transformer_encoder_pallas.1} parent=1 // pred_check_branch
      %41 = sbr.rel (0) target = $region45
    $region44: #{transformer_encoder_pallas.1} parent=1 // pred_region
      _
    $region45: #{transformer_encoder_pallas.1} parent=1 // pred_fallthru
      _
    // Predicated region
    $region46: #{transformer_encoder_pallas.1} parent=1 // pred_check
      _
    $region47: #{transformer_encoder_pallas.1} parent=1 // pred_check_branch
      %43 = sbr.rel (0) target = $region49
    $region48: #{transformer_encoder_pallas.1} parent=1 // pred_region
      _
    $region49: #{transformer_encoder_pallas.1} parent=1 // pred_fallthru
      _
    // Predicated region
    $region50: #{transformer_encoder_pallas.1} parent=1 // pred_check
      _
    $region51: #{transformer_encoder_pallas.1} parent=1 // pred_check_branch
      %45 = sbr.rel (0) target = $region53
    $region52: #{transformer_encoder_pallas.1} parent=1 // pred_region
      _
    $region53: #{transformer_encoder_pallas.1} parent=1 // pred_fallthru
      _
    // Predicated region
    $region54: #{transformer_encoder_pallas.1} parent=1 // pred_check
      _
    $region55: #{transformer_encoder_pallas.1} parent=1 // pred_check_branch
      %47 = sbr.rel (0) target = $region57
    $region56: #{transformer_encoder_pallas.1} parent=1 // pred_region
      _
    $region57: #{transformer_encoder_pallas.1} parent=1 // pred_fallthru
      _
    %v48 = vld [vmem:[%s0] sm:$0xff]
    %v49 = vld [vmem:[%s0 + $0x8] sm:$0xff]
    %v50 = vld [vmem:[%s1] sm:$0xff]
    %v51 = vld [vmem:[%s1 + $0x8] sm:$0xff]
    %v52 = vld [vmem:[%s2] sm:$0xff]
    %v53 = vld [vmem:[%s2 + $0x8] sm:$0xff]
    %v54 = vld [vmem:[%s2 + $0x10] sm:$0xff]
    %v55 = vld [vmem:[%s2 + $0x18] sm:$0xff]
    %v56 = vld [vmem:[%s3] sm:$0x1]
    %v58 = vperm.slane %v56, 0
    %vm60 = vcmask 261120
    %v62 = vsel %vm60, %v48, 0
    %v65 = vsel %vm60, %v49, 0
    %67 = vmatpush.msra.mxu0 0.0
    %68 = vmatpush.msra.mxu0 0.0
    %69 = vmatpush.msra.mxu0 0.0
    %70 = vmatpush.msra.mxu0 0.0
    %71 = vmatpush.msra.mxu0 0.0
    %72 = vmatpush.msra.mxu0 0.0
    %73 = vmatpush.msra.mxu0 0.0
    %74 = vmatpush.msra.mxu0 0.0
    %75 = vmatpush.msra.mxu0 0.0
    %76 = vmatpush.msra.mxu0 0.0
    %77 = vmatpush.msra.mxu0 0.0
    %78 = vmatpush.msra.mxu0 0.0
    %79 = vmatpush.msra.mxu0 %v55
    %80 = vmatpush.msra.mxu0 %v54
    %81 = vmatpush.msra.mxu0 %v53
    %82 = vmatpush.msra.mxu0 %v52
    %83 = vmatmul.f32.gmra.mxu0 %v62
    %v84 = vpop.f32.mrf.mxu0
    %v85 = vadd.f32 %v58, %v84
    %86 = vmatmul.f32.gmra.mxu0 %v65
    %v87 = vpop.f32.mrf.mxu0
    %v88 = vadd.f32 %v58, %v87
    %89 = vdwg.mxu0
    %92 = vrot.lane.b32.xlu0 %v85, 120
    %v93 = vpop.permute.xlu0 %92
    %94 = vrot.lane.b32.xlu0 %v88, 120
    %v95 = vpop.permute.xlu0 %94
    %96 = vrot.lane.b32.xlu0 %v85, 112
    %v97 = vpop.permute.xlu0 %96
    %98 = vrot.lane.b32.xlu0 %v88, 112
    %v99 = vpop.permute.xlu0 %98
    %100 = vrot.lane.b32.xlu0 %v85, 104
    %v101 = vpop.permute.xlu0 %100
    %102 = vrot.lane.b32.xlu0 %v88, 104
    %v103 = vpop.permute.xlu0 %102
    %104 = vrot.lane.b32.xlu0 %v85, 96
    %v105 = vpop.permute.xlu0 %104
    %106 = vrot.lane.b32.xlu0 %v88, 96
    %v107 = vpop.permute.xlu0 %106
    %vm108 = vcmask 64512
    %v109 = vsel %vm108, %v85, 0
    %v111 = vsel %vm108, %v88, 0
    %v113 = vsel %vm108, %v105, 0
    %v115 = vsel %vm108, %v107, 0
    %117 = vmatpush.xpose.msra.mxu0 0.0
    %118 = vmatpush.xpose.msra.mxu0 0.0
    %119 = vmatpush.xpose.msra.mxu0 0.0
    %120 = vmatpush.xpose.msra.mxu0 0.0
    %121 = vmatpush.xpose.msra.mxu0 0.0
    %122 = vmatpush.xpose.msra.mxu0 0.0
    %123 = vmatpush.xpose.msra.mxu0 0.0
    %124 = vmatpush.xpose.msra.mxu0 0.0
    %125 = vmatpush.xpose.msra.mxu0 0.0
    %126 = vmatpush.xpose.msra.mxu0 0.0
    %127 = vmatpush.xpose.msra.mxu0 0.0
    %128 = vmatpush.xpose.msra.mxu0 0.0
    %129 = vmatpush.xpose.msra.mxu0 0.0
    %130 = vmatpush.xpose.msra.mxu0 0.0
    %131 = vmatpush.xpose.msra.mxu0 %v115
    %132 = vmatpush.xpose.msra.mxu0 %v113
    %133 = vmatmul.f32.gmra.mxu0 %v109
    %v134 = vpop.f32.mrf.mxu0
    %v135 = vadd.f32 %v50, %v134
    %136 = vmatmul.f32.gmra.mxu0 %v111
    %v137 = vpop.f32.mrf.mxu0
    %v138 = vadd.f32 %v51, %v137
    %139 = vdwg.mxu0
    %140 = vrot.lane.b32.xlu0 %v93, 96
    %v141 = vpop.permute.xlu0 %140
    %142 = vrot.lane.b32.xlu0 %v95, 96
    %v143 = vpop.permute.xlu0 %142
    %v144 = vsel %vm108, %v93, 0
    %v146 = vsel %vm108, %v95, 0
    %v148 = vsel %vm108, %v141, 0
    %v150 = vsel %vm108, %v143, 0
    %152 = vmatpush.xpose.msra.mxu0 0.0
    %153 = vmatpush.xpose.msra.mxu0 0.0
    %154 = vmatpush.xpose.msra.mxu0 0.0
    %155 = vmatpush.xpose.msra.mxu0 0.0
    %156 = vmatpush.xpose.msra.mxu0 0.0
    %157 = vmatpush.xpose.msra.mxu0 0.0
    %158 = vmatpush.xpose.msra.mxu0 0.0
    %159 = vmatpush.xpose.msra.mxu0 0.0
    %160 = vmatpush.xpose.msra.mxu0 0.0
    %161 = vmatpush.xpose.msra.mxu0 0.0
    %162 = vmatpush.xpose.msra.mxu0 0.0
    %163 = vmatpush.xpose.msra.mxu0 0.0
    %164 = vmatpush.xpose.msra.mxu0 0.0
    %165 = vmatpush.xpose.msra.mxu0 0.0
    %166 = vmatpush.xpose.msra.mxu0 %v150
    %167 = vmatpush.xpose.msra.mxu0 %v148
    %168 = vmatmul.f32.gmra.mxu0 %v144
    %v169 = vpop.f32.mrf.mxu0
    %v170 = vadd.f32 %v50, %v169
    %171 = vmatmul.f32.gmra.mxu0 %v146
    %v172 = vpop.f32.mrf.mxu0
    %v173 = vadd.f32 %v51, %v172
    %174 = vdwg.mxu0
    %175 = vrot.lane.b32.xlu0 %v97, 96
    %v176 = vpop.permute.xlu0 %175
    %177 = vrot.lane.b32.xlu0 %v99, 96
    %v178 = vpop.permute.xlu0 %177
    %v179 = vsel %vm108, %v97, 0
    %v181 = vsel %vm108, %v99, 0
    %v183 = vsel %vm108, %v176, 0
    %v185 = vsel %vm108, %v178, 0
    %187 = vmatpush.xpose.msra.mxu0 0.0
    %188 = vmatpush.xpose.msra.mxu0 0.0
    %189 = vmatpush.xpose.msra.mxu0 0.0
    %190 = vmatpush.xpose.msra.mxu0 0.0
    %191 = vmatpush.xpose.msra.mxu0 0.0
    %192 = vmatpush.xpose.msra.mxu0 0.0
    %193 = vmatpush.xpose.msra.mxu0 0.0
    %194 = vmatpush.xpose.msra.mxu0 0.0
    %195 = vmatpush.xpose.msra.mxu0 0.0
    %196 = vmatpush.xpose.msra.mxu0 0.0
    %197 = vmatpush.xpose.msra.mxu0 0.0
    %198 = vmatpush.xpose.msra.mxu0 0.0
    %199 = vmatpush.xpose.msra.mxu0 0.0
    %200 = vmatpush.xpose.msra.mxu0 0.0
    %201 = vmatpush.xpose.msra.mxu0 %v185
    %202 = vmatpush.xpose.msra.mxu0 %v183
    %203 = vmatmul.f32.gmra.mxu0 %v179
    %v204 = vpop.f32.mrf.mxu0
    %v205 = vadd.f32 %v50, %v204
    %206 = vmatmul.f32.gmra.mxu0 %v181
    %v207 = vpop.f32.mrf.mxu0
    %v208 = vadd.f32 %v51, %v207
    %209 = vdwg.mxu0
    %210 = vrot.lane.b32.xlu0 %v101, 96
    %v211 = vpop.permute.xlu0 %210
    %212 = vrot.lane.b32.xlu0 %v103, 96
    %v213 = vpop.permute.xlu0 %212
    %v214 = vsel %vm108, %v101, 0
    %v216 = vsel %vm108, %v103, 0
    %v218 = vsel %vm108, %v211, 0
    %v220 = vsel %vm108, %v213, 0
    %222 = vmatpush.xpose.msra.mxu0 0.0
    %223 = vmatpush.xpose.msra.mxu0 0.0
    %224 = vmatpush.xpose.msra.mxu0 0.0
    %225 = vmatpush.xpose.msra.mxu0 0.0
    %226 = vmatpush.xpose.msra.mxu0 0.0
    %227 = vmatpush.xpose.msra.mxu0 0.0
    %228 = vmatpush.xpose.msra.mxu0 0.0
    %229 = vmatpush.xpose.msra.mxu0 0.0
    %230 = vmatpush.xpose.msra.mxu0 0.0
    %231 = vmatpush.xpose.msra.mxu0 0.0
    %232 = vmatpush.xpose.msra.mxu0 0.0
    %233 = vmatpush.xpose.msra.mxu0 0.0
    %234 = vmatpush.xpose.msra.mxu0 0.0
    %235 = vmatpush.xpose.msra.mxu0 0.0
    %236 = vmatpush.xpose.msra.mxu0 %v220
    %237 = vmatpush.xpose.msra.mxu0 %v218
    %238 = vmatmul.f32.gmra.mxu0 %v214
    %v239 = vpop.f32.mrf.mxu0
    %v240 = vadd.f32 %v50, %v239
    %241 = vmatmul.f32.gmra.mxu0 %v216
    %v242 = vpop.f32.mrf.mxu0
    %v243 = vadd.f32 %v51, %v242
    %244 = vdwg.mxu0
    %vm245 = vcmask 130048
    %v246 = vsel %vm245, %v135, -inf
    %247 = vmax.xlane.f32.xlu0 %v246
    %v248 = vpop.xlane.xlu0 %247
    %v249 = vsel %vm245, %v138, -inf
    %250 = vmax.xlane.f32.xlu0 %v249
    %v251 = vpop.xlane.xlu0 %250
    %v252 = vsel %vm245, %v170, -inf
    %253 = vmax.xlane.f32.xlu0 %v252
    %v254 = vpop.xlane.xlu0 %253
    %v255 = vsel %vm245, %v173, -inf
    %256 = vmax.xlane.f32.xlu0 %v255
    %v257 = vpop.xlane.xlu0 %256
    %v258 = vsel %vm245, %v205, -inf
    %259 = vmax.xlane.f32.xlu0 %v258
    %v260 = vpop.xlane.xlu0 %259
    %v261 = vsel %vm245, %v208, -inf
    %262 = vmax.xlane.f32.xlu0 %v261
    %v263 = vpop.xlane.xlu0 %262
    %v264 = vsel %vm245, %v240, -inf
    %265 = vmax.xlane.f32.xlu0 %v264
    %v266 = vpop.xlane.xlu0 %265
    %v267 = vsel %vm245, %v243, -inf
    %268 = vmax.xlane.f32.xlu0 %v267
    %v269 = vpop.xlane.xlu0 %268
    %v270 = vsub.f32 %v135, %v248
    %v271 = vsub.f32 %v138, %v251
    %v272 = vsub.f32 %v170, %v254
    %v273 = vsub.f32 %v173, %v257
    %v274 = vsub.f32 %v205, %v260
    %v275 = vsub.f32 %v208, %v263
    %v276 = vsub.f32 %v240, %v266
    %v277 = vsub.f32 %v243, %v269
    %v278 = vmul.f32 %v270, 1.442695
    %v279 = vpow.pop %v278
    %v280 = vmul.f32 %v271, 1.442695
    %v281 = vpow.pop %v280
    %v282 = vmul.f32 %v272, 1.442695
    %v283 = vpow.pop %v282
    %v284 = vmul.f32 %v273, 1.442695
    %v285 = vpow.pop %v284
    %v286 = vmul.f32 %v274, 1.442695
    %v287 = vpow.pop %v286
    %v288 = vmul.f32 %v275, 1.442695
    %v289 = vpow.pop %v288
    %v290 = vmul.f32 %v276, 1.442695
    %v291 = vpow.pop %v290
    %v292 = vmul.f32 %v277, 1.442695
    %v293 = vpow.pop %v292
    %v294 = vsel %vm245, %v279, 0.0
    %295 = vadd.xlane.f32.xlu0 %v294
    %v296 = vpop.xlane.xlu0 %295
    %v297 = vsel %vm245, %v281, 0.0
    %298 = vadd.xlane.f32.xlu0 %v297
    %v299 = vpop.xlane.xlu0 %298
    %v300 = vsel %vm245, %v283, 0.0
    %301 = vadd.xlane.f32.xlu0 %v300
    %v302 = vpop.xlane.xlu0 %301
    %v303 = vsel %vm245, %v285, 0.0
    %304 = vadd.xlane.f32.xlu0 %v303
    %v305 = vpop.xlane.xlu0 %304
    %v306 = vsel %vm245, %v287, 0.0
    %307 = vadd.xlane.f32.xlu0 %v306
    %v308 = vpop.xlane.xlu0 %307
    %v309 = vsel %vm245, %v289, 0.0
    %310 = vadd.xlane.f32.xlu0 %v309
    %v311 = vpop.xlane.xlu0 %310
    %v312 = vsel %vm245, %v291, 0.0
    %313 = vadd.xlane.f32.xlu0 %v312
    %v314 = vpop.xlane.xlu0 %313
    %v315 = vsel %vm245, %v293, 0.0
    %316 = vadd.xlane.f32.xlu0 %v315
    %v317 = vpop.xlane.xlu0 %316
    %v318 = vrcp.pop %v296
    %v319 = vrcp.pop %v299
    %v320 = vrcp.pop %v302
    %v321 = vrcp.pop %v305
    %v322 = vrcp.pop %v308
    %v323 = vrcp.pop %v311
    %v324 = vrcp.pop %v314
    %v325 = vrcp.pop %v317
    %v326 = vmul.f32 %v279, %v318
    %v327 = vmul.f32 %v281, %v319
    %v328 = vmul.f32 %v283, %v320
    %v329 = vmul.f32 %v285, %v321
    %v330 = vmul.f32 %v287, %v322
    %v331 = vmul.f32 %v289, %v323
    %v332 = vmul.f32 %v291, %v324
    %v333 = vmul.f32 %v293, %v325
    %334 = vrot.lane.b32.xlu0 %v85, 64
    %v335 = vpop.permute.xlu0 %334
    %336 = vrot.lane.b32.xlu0 %v88, 64
    %v337 = vpop.permute.xlu0 %336
    %v341 = vsel %vm245, %v326, 0
    %v344 = vsel %vm245, %v327, 0
    %346 = vmatpush.msra.mxu0 0.0
    %347 = vmatpush.msra.mxu0 0.0
    %348 = vmatpush.msra.mxu0 0.0
    %349 = vmatpush.msra.mxu0 0.0
    %350 = vmatpush.msra.mxu0 0.0
    %351 = vmatpush.msra.mxu0 0.0
    %352 = vmatpush.msra.mxu0 0.0
    %353 = vmatpush.msra.mxu0 0.0
    %354 = vmatpush.msra.mxu0 0.0
    %355 = vmatpush.msra.mxu0 0.0
    %356 = vmatpush.msra.mxu0 0.0
    %357 = vmatpush.msra.mxu0 0.0
    %358 = vmatpush.msra.mxu0 0.0
    %359 = vmatpush.msra.mxu0 0.0
    %360 = vmatpush.msra.mxu0 %v337
    %361 = vmatpush.msra.mxu0 %v335
    %362 = vmatmul.f32.gmra.mxu0 %v341
    %v363 = vpop.f32.mrf.mxu0
    %v364 = vadd.f32 0.0, %v363
    %365 = vmatmul.f32.gmra.mxu0 %v344
    %v366 = vpop.f32.mrf.mxu0
    %v367 = vadd.f32 0.0, %v366
    %368 = vdwg.mxu0
    %369 = vrot.lane.b32.xlu0 %v93, 64
    %v370 = vpop.permute.xlu0 %369
    %371 = vrot.lane.b32.xlu0 %v95, 64
    %v372 = vpop.permute.xlu0 %371
    %v376 = vsel %vm245, %v328, 0
    %v379 = vsel %vm245, %v329, 0
    %381 = vmatpush.msra.mxu0 0.0
    %382 = vmatpush.msra.mxu0 0.0
    %383 = vmatpush.msra.mxu0 0.0
    %384 = vmatpush.msra.mxu0 0.0
    %385 = vmatpush.msra.mxu0 0.0
    %386 = vmatpush.msra.mxu0 0.0
    %387 = vmatpush.msra.mxu0 0.0
    %388 = vmatpush.msra.mxu0 0.0
    %389 = vmatpush.msra.mxu0 0.0
    %390 = vmatpush.msra.mxu0 0.0
    %391 = vmatpush.msra.mxu0 0.0
    %392 = vmatpush.msra.mxu0 0.0
    %393 = vmatpush.msra.mxu0 0.0
    %394 = vmatpush.msra.mxu0 0.0
    %395 = vmatpush.msra.mxu0 %v372
    %396 = vmatpush.msra.mxu0 %v370
    %397 = vmatmul.f32.gmra.mxu0 %v376
    %v398 = vpop.f32.mrf.mxu0
    %v399 = vadd.f32 0.0, %v398
    %400 = vmatmul.f32.gmra.mxu0 %v379
    %v401 = vpop.f32.mrf.mxu0
    %v402 = vadd.f32 0.0, %v401
    %403 = vdwg.mxu0
    %404 = vrot.lane.b32.xlu0 %v97, 64
    %v405 = vpop.permute.xlu0 %404
    %406 = vrot.lane.b32.xlu0 %v99, 64
    %v407 = vpop.permute.xlu0 %406
    %v411 = vsel %vm245, %v330, 0
    %v414 = vsel %vm245, %v331, 0
    %416 = vmatpush.msra.mxu0 0.0
    %417 = vmatpush.msra.mxu0 0.0
    %418 = vmatpush.msra.mxu0 0.0
    %419 = vmatpush.msra.mxu0 0.0
    %420 = vmatpush.msra.mxu0 0.0
    %421 = vmatpush.msra.mxu0 0.0
    %422 = vmatpush.msra.mxu0 0.0
    %423 = vmatpush.msra.mxu0 0.0
    %424 = vmatpush.msra.mxu0 0.0
    %425 = vmatpush.msra.mxu0 0.0
    %426 = vmatpush.msra.mxu0 0.0
    %427 = vmatpush.msra.mxu0 0.0
    %428 = vmatpush.msra.mxu0 0.0
    %429 = vmatpush.msra.mxu0 0.0
    %430 = vmatpush.msra.mxu0 %v407
    %431 = vmatpush.msra.mxu0 %v405
    %432 = vmatmul.f32.gmra.mxu0 %v411
    %v433 = vpop.f32.mrf.mxu0
    %v434 = vadd.f32 0.0, %v433
    %435 = vmatmul.f32.gmra.mxu0 %v414
    %v436 = vpop.f32.mrf.mxu0
    %v437 = vadd.f32 0.0, %v436
    %438 = vdwg.mxu0
    %439 = vrot.lane.b32.xlu0 %v101, 64
    %v440 = vpop.permute.xlu0 %439
    %441 = vrot.lane.b32.xlu0 %v103, 64
    %v442 = vpop.permute.xlu0 %441
    %v446 = vsel %vm245, %v332, 0
    %v449 = vsel %vm245, %v333, 0
    %451 = vmatpush.msra.mxu0 0.0
    %452 = vmatpush.msra.mxu0 0.0
    %453 = vmatpush.msra.mxu0 0.0
    %454 = vmatpush.msra.mxu0 0.0
    %455 = vmatpush.msra.mxu0 0.0
    %456 = vmatpush.msra.mxu0 0.0
    %457 = vmatpush.msra.mxu0 0.0
    %458 = vmatpush.msra.mxu0 0.0
    %459 = vmatpush.msra.mxu0 0.0
    %460 = vmatpush.msra.mxu0 0.0
    %461 = vmatpush.msra.mxu0 0.0
    %462 = vmatpush.msra.mxu0 0.0
    %463 = vmatpush.msra.mxu0 0.0
    %464 = vmatpush.msra.mxu0 0.0
    %465 = vmatpush.msra.mxu0 %v442
    %466 = vmatpush.msra.mxu0 %v440
    %467 = vmatmul.f32.gmra.mxu0 %v446
    %v468 = vpop.f32.mrf.mxu0
    %v469 = vadd.f32 0.0, %v468
    %470 = vmatmul.f32.gmra.mxu0 %v449
    %v471 = vpop.f32.mrf.mxu0
    %v472 = vadd.f32 0.0, %v471
    %473 = vdwg.mxu0
    %476 = vrot.lane.b32.xlu0 %v399, 8
    %v477 = vpop.permute.xlu0 %476
    %478 = vrot.lane.b32.xlu0 %v402, 8
    %v479 = vpop.permute.xlu0 %478
    %484 = vrot.lane.b32.xlu0 %v434, 16
    %v485 = vpop.permute.xlu0 %484
    %486 = vrot.lane.b32.xlu0 %v437, 16
    %v487 = vpop.permute.xlu0 %486
    %492 = vrot.lane.b32.xlu0 %v469, 24
    %v493 = vpop.permute.xlu0 %492
    %494 = vrot.lane.b32.xlu0 %v472, 24
    %v495 = vpop.permute.xlu0 %494
    %v498 = vsel %vm108, %v364, %v477
    %v499 = vsel %vm108, %v367, %v479
    %v500 = vsel %vm245, %v498, %v485
    %v501 = vsel %vm245, %v499, %v487
    %vm502 = vcmask 195584
    %v503 = vsel %vm502, %v500, %v493
    %v504 = vsel %vm502, %v501, %v495
    %v505 = vld [vmem:[%s4] sm:$0xff]
    %v506 = vld [vmem:[%s4 + $0x8] sm:$0xff]
    %v507 = vld [vmem:[%s4 + $0x10] sm:$0xff]
    %v508 = vld [vmem:[%s4 + $0x18] sm:$0xff]
    %v509 = vld [vmem:[%s5] sm:$0x1]
    %v511 = vperm.slane %v509, 0
    %v514 = vsel %vm60, %v503, 0
    %v517 = vsel %vm60, %v504, 0
    %519 = vmatpush.msra.mxu0 0.0
    %520 = vmatpush.msra.mxu0 0.0
    %521 = vmatpush.msra.mxu0 0.0
    %522 = vmatpush.msra.mxu0 0.0
    %523 = vmatpush.msra.mxu0 0.0
    %524 = vmatpush.msra.mxu0 0.0
    %525 = vmatpush.msra.mxu0 0.0
    %526 = vmatpush.msra.mxu0 0.0
    %527 = vmatpush.msra.mxu0 0.0
    %528 = vmatpush.msra.mxu0 0.0
    %529 = vmatpush.msra.mxu0 0.0
    %530 = vmatpush.msra.mxu0 0.0
    %531 = vmatpush.msra.mxu0 %v508
    %532 = vmatpush.msra.mxu0 %v507
    %533 = vmatpush.msra.mxu0 %v506
    %534 = vmatpush.msra.mxu0 %v505
    %535 = vmatmul.f32.gmra.mxu0 %v514
    %v536 = vpop.f32.mrf.mxu0
    %v537 = vadd.f32 %v511, %v536
    %538 = vmatmul.f32.gmra.mxu0 %v517
    %v539 = vpop.f32.mrf.mxu0
    %v540 = vadd.f32 %v511, %v539
    %541 = vdwg.mxu0
    %v542 = vadd.f32 %v48, %v537
    %v543 = vadd.f32 %v49, %v540
    %v544 = vld [vmem:[%s6] sm:$0x1]
    %v545 = vld [vmem:[%s7] sm:$0x1]
    %v546 = vsel %vm60, %v542, 0.0
    %547 = vadd.xlane.f32.xlu0 %v546
    %v548 = vpop.xlane.xlu0 %547
    %v549 = vsel %vm60, %v543, 0.0
    %550 = vadd.xlane.f32.xlu0 %v549
    %v551 = vpop.xlane.xlu0 %550
    %v552 = vrcp.pop 32.0
    %v553 = vmul.f32 32.0, %v552
    %v554 = vsub.f32 1.0, %v553
    %v555 = vmul.f32 %v552, %v554
    %v556 = vadd.f32 %v552, %v555
    %vm557 = vweird.f32 %v552
    %v558 = vsel %vm557, %v552, %v556
    %v559 = vmul.f32 %v548, %v558
    %v560 = vmul.f32 %v551, %v558
    %v561 = vsub.f32 %v542, %v559
    %v562 = vsub.f32 %v543, %v560
    %v563 = vmul.f32 %v561, %v561
    %v564 = vmul.f32 %v562, %v562
    %v565 = vsel %vm60, %v563, 0.0
    %566 = vadd.xlane.f32.xlu0 %v565
    %v567 = vpop.xlane.xlu0 %566
    %v568 = vsel %vm60, %v564, 0.0
    %569 = vadd.xlane.f32.xlu0 %v568
    %v570 = vpop.xlane.xlu0 %569
    %v571 = vmul.f32 %v567, %v558
    %v572 = vmul.f32 %v570, %v558
    %v573 = vadd.f32 %v571, 1e-05
    %v574 = vadd.f32 %v572, 1e-05
    %v575 = vrsqrt.pop %v573
    %v576 = vmul.f32 %v575, %v573
    %v577 = vmul.f32 %v576, %v575
    %v578 = vmul.f32 0.5, %v577
    %v579 = vsub.f32 1.5, %v578
    %v580 = vmul.f32 %v575, %v579
    %vm581 = vweird.f32 %v573
    %vm582 = vweird.f32 %v575
    %vm583 = vmor %vm581, %vm582
    %v584 = vsel %vm583, %v575, %v580
    %v585 = vrsqrt.pop %v574
    %v586 = vmul.f32 %v585, %v574
    %v587 = vmul.f32 %v586, %v585
    %v588 = vmul.f32 0.5, %v587
    %v589 = vsub.f32 1.5, %v588
    %v590 = vmul.f32 %v585, %v589
    %vm591 = vweird.f32 %v574
    %vm592 = vweird.f32 %v585
    %vm593 = vmor %vm591, %vm592
    %v594 = vsel %vm593, %v585, %v590
    %v595 = vmul.f32 %v561, %v584
    %v596 = vmul.f32 %v562, %v594
    %v598 = vperm.slane %v544, 0
    %v600 = vmul.f32 %v595, %v598
    %v601 = vmul.f32 %v596, %v598
    %v603 = vperm.slane %v545, 0
    %v605 = vadd.f32 %v600, %v603
    %v606 = vadd.f32 %v601, %v603
    %v607 = vld [vmem:[%s8] sm:$0xff]
    %v608 = vld [vmem:[%s8 + $0x8] sm:$0xff]
    %v609 = vld [vmem:[%s8 + $0x10] sm:$0xff]
    %v610 = vld [vmem:[%s8 + $0x18] sm:$0xff]
    %v611 = vld [vmem:[%s9] sm:$0x1]
    %v613 = vperm.slane %v611, 0
    %v616 = vsel %vm60, %v605, 0
    %v619 = vsel %vm60, %v606, 0
    %621 = vmatpush.msra.mxu0 0.0
    %622 = vmatpush.msra.mxu0 0.0
    %623 = vmatpush.msra.mxu0 0.0
    %624 = vmatpush.msra.mxu0 0.0
    %625 = vmatpush.msra.mxu0 0.0
    %626 = vmatpush.msra.mxu0 0.0
    %627 = vmatpush.msra.mxu0 0.0
    %628 = vmatpush.msra.mxu0 0.0
    %629 = vmatpush.msra.mxu0 0.0
    %630 = vmatpush.msra.mxu0 0.0
    %631 = vmatpush.msra.mxu0 0.0
    %632 = vmatpush.msra.mxu0 0.0
    %633 = vmatpush.msra.mxu0 %v610
    %634 = vmatpush.msra.mxu0 %v609
    %635 = vmatpush.msra.mxu0 %v608
    %636 = vmatpush.msra.mxu0 %v607
    %637 = vmatmul.f32.gmra.mxu0 %v616
    %v638 = vpop.f32.mrf.mxu0
    %v639 = vadd.f32 %v613, %v638
    %640 = vmatmul.f32.gmra.mxu0 %v619
    %v641 = vpop.f32.mrf.mxu0
    %v642 = vadd.f32 %v613, %v641
    %643 = vdwg.mxu0
    %v644 = vmax.f32 %v639, 0.0
    %v645 = vmax.f32 %v642, 0.0
    %v646 = vld [vmem:[%s10] sm:$0xff]
    %v647 = vld [vmem:[%s10 + $0x8] sm:$0xff]
    %v648 = vld [vmem:[%s10 + $0x10] sm:$0xff]
    %v649 = vld [vmem:[%s10 + $0x18] sm:$0xff]
    %v650 = vld [vmem:[%s10 + $0x20] sm:$0xff]
    %v651 = vld [vmem:[%s10 + $0x28] sm:$0xff]
    %v652 = vld [vmem:[%s10 + $0x30] sm:$0xff]
    %v653 = vld [vmem:[%s10 + $0x38] sm:$0xff]
    %v654 = vld [vmem:[%s11] sm:$0x1]
    %v656 = vperm.slane %v654, 0
    %vm658 = vcmask 523264
    %v660 = vsel %vm658, %v644, 0
    %v663 = vsel %vm658, %v645, 0
    %665 = vmatpush.msra.mxu0 0.0
    %666 = vmatpush.msra.mxu0 0.0
    %667 = vmatpush.msra.mxu0 0.0
    %668 = vmatpush.msra.mxu0 0.0
    %669 = vmatpush.msra.mxu0 0.0
    %670 = vmatpush.msra.mxu0 0.0
    %671 = vmatpush.msra.mxu0 0.0
    %672 = vmatpush.msra.mxu0 0.0
    %673 = vmatpush.msra.mxu0 %v653
    %674 = vmatpush.msra.mxu0 %v652
    %675 = vmatpush.msra.mxu0 %v651
    %676 = vmatpush.msra.mxu0 %v650
    %677 = vmatpush.msra.mxu0 %v649
    %678 = vmatpush.msra.mxu0 %v648
    %679 = vmatpush.msra.mxu0 %v647
    %680 = vmatpush.msra.mxu0 %v646
    %681 = vmatmul.f32.gmra.mxu0 %v660
    %v682 = vpop.f32.mrf.mxu0
    %v683 = vadd.f32 %v656, %v682
    %684 = vmatmul.f32.gmra.mxu0 %v663
    %v685 = vpop.f32.mrf.mxu0
    %v686 = vadd.f32 %v656, %v685
    %687 = vdwg.mxu0
    %v688 = vadd.f32 %v605, %v683
    %v689 = vadd.f32 %v606, %v686
    %v690 = vld [vmem:[%s12] sm:$0x1]
    %v691 = vld [vmem:[%s13] sm:$0x1]
    %v692 = vsel %vm60, %v688, 0.0
    %693 = vadd.xlane.f32.xlu0 %v692
    %v694 = vpop.xlane.xlu0 %693
    %v695 = vsel %vm60, %v689, 0.0
    %696 = vadd.xlane.f32.xlu0 %v695
    %v697 = vpop.xlane.xlu0 %696
    %v698 = vmul.f32 %v694, %v558
    %v699 = vmul.f32 %v697, %v558
    %v700 = vsub.f32 %v688, %v698
    %v701 = vsub.f32 %v689, %v699
    %v702 = vmul.f32 %v700, %v700
    %v703 = vmul.f32 %v701, %v701
    %v704 = vsel %vm60, %v702, 0.0
    %705 = vadd.xlane.f32.xlu0 %v704
    %v706 = vpop.xlane.xlu0 %705
    %v707 = vsel %vm60, %v703, 0.0
    %708 = vadd.xlane.f32.xlu0 %v707
    %v709 = vpop.xlane.xlu0 %708
    %v710 = vmul.f32 %v706, %v558
    %v711 = vmul.f32 %v709, %v558
    %v712 = vadd.f32 %v710, 1e-05
    %v713 = vadd.f32 %v711, 1e-05
    %v714 = vrsqrt.pop %v712
    %v715 = vmul.f32 %v714, %v712
    %v716 = vmul.f32 %v715, %v714
    %v717 = vmul.f32 0.5, %v716
    %v718 = vsub.f32 1.5, %v717
    %v719 = vmul.f32 %v714, %v718
    %vm720 = vweird.f32 %v712
    %vm721 = vweird.f32 %v714
    %vm722 = vmor %vm720, %vm721
    %v723 = vsel %vm722, %v714, %v719
    %v724 = vrsqrt.pop %v713
    %v725 = vmul.f32 %v724, %v713
    %v726 = vmul.f32 %v725, %v724
    %v727 = vmul.f32 0.5, %v726
    %v728 = vsub.f32 1.5, %v727
    %v729 = vmul.f32 %v724, %v728
    %vm730 = vweird.f32 %v713
    %vm731 = vweird.f32 %v724
    %vm732 = vmor %vm730, %vm731
    %v733 = vsel %vm732, %v724, %v729
    %v734 = vmul.f32 %v700, %v723
    %v735 = vmul.f32 %v701, %v733
    %v737 = vperm.slane %v690, 0
    %v739 = vmul.f32 %v734, %v737
    %v740 = vmul.f32 %v735, %v737
    %v742 = vperm.slane %v691, 0
    %v744 = vadd.f32 %v739, %v742
    %v745 = vadd.f32 %v740, %v742
    %s746 = scalar_lea.vmem %s2, 32
    %v747 = vld [vmem:[%s746] sm:$0xff]
    %v748 = vld [vmem:[%s746 + $0x8] sm:$0xff]
    %v749 = vld [vmem:[%s746 + $0x10] sm:$0xff]
    %v750 = vld [vmem:[%s746 + $0x18] sm:$0xff]
    %s751 = scalar_lea.vmem %s3, 1
    %v752 = vld [vmem:[%s751] sm:$0x1]
    %v754 = vperm.slane %v752, 0
    %v757 = vsel %vm60, %v744, 0
    %v760 = vsel %vm60, %v745, 0
    %762 = vmatpush.msra.mxu0 0.0
    %763 = vmatpush.msra.mxu0 0.0
    %764 = vmatpush.msra.mxu0 0.0
    %765 = vmatpush.msra.mxu0 0.0
    %766 = vmatpush.msra.mxu0 0.0
    %767 = vmatpush.msra.mxu0 0.0
    %768 = vmatpush.msra.mxu0 0.0
    %769 = vmatpush.msra.mxu0 0.0
    %770 = vmatpush.msra.mxu0 0.0
    %771 = vmatpush.msra.mxu0 0.0
    %772 = vmatpush.msra.mxu0 0.0
    %773 = vmatpush.msra.mxu0 0.0
    %774 = vmatpush.msra.mxu0 %v750
    %775 = vmatpush.msra.mxu0 %v749
    %776 = vmatpush.msra.mxu0 %v748
    %777 = vmatpush.msra.mxu0 %v747
    %778 = vmatmul.f32.gmra.mxu0 %v757
    %v779 = vpop.f32.mrf.mxu0
    %v780 = vadd.f32 %v754, %v779
    %781 = vmatmul.f32.gmra.mxu0 %v760
    %v782 = vpop.f32.mrf.mxu0
    %v783 = vadd.f32 %v754, %v782
    %784 = vdwg.mxu0
    %787 = vrot.lane.b32.xlu0 %v780, 120
    %v788 = vpop.permute.xlu0 %787
    %789 = vrot.lane.b32.xlu0 %v783, 120
    %v790 = vpop.permute.xlu0 %789
    %791 = vrot.lane.b32.xlu0 %v780, 112
    %v792 = vpop.permute.xlu0 %791
    %793 = vrot.lane.b32.xlu0 %v783, 112
    %v794 = vpop.permute.xlu0 %793
    %795 = vrot.lane.b32.xlu0 %v780, 104
    %v796 = vpop.permute.xlu0 %795
    %797 = vrot.lane.b32.xlu0 %v783, 104
    %v798 = vpop.permute.xlu0 %797
    %799 = vrot.lane.b32.xlu0 %v780, 96
    %v800 = vpop.permute.xlu0 %799
    %801 = vrot.lane.b32.xlu0 %v783, 96
    %v802 = vpop.permute.xlu0 %801
    %v803 = vsel %vm108, %v780, 0
    %v805 = vsel %vm108, %v783, 0
    %v807 = vsel %vm108, %v800, 0
    %v809 = vsel %vm108, %v802, 0
    %811 = vmatpush.xpose.msra.mxu0 0.0
    %812 = vmatpush.xpose.msra.mxu0 0.0
    %813 = vmatpush.xpose.msra.mxu0 0.0
    %814 = vmatpush.xpose.msra.mxu0 0.0
    %815 = vmatpush.xpose.msra.mxu0 0.0
    %816 = vmatpush.xpose.msra.mxu0 0.0
    %817 = vmatpush.xpose.msra.mxu0 0.0
    %818 = vmatpush.xpose.msra.mxu0 0.0
    %819 = vmatpush.xpose.msra.mxu0 0.0
    %820 = vmatpush.xpose.msra.mxu0 0.0
    %821 = vmatpush.xpose.msra.mxu0 0.0
    %822 = vmatpush.xpose.msra.mxu0 0.0
    %823 = vmatpush.xpose.msra.mxu0 0.0
    %824 = vmatpush.xpose.msra.mxu0 0.0
    %825 = vmatpush.xpose.msra.mxu0 %v809
    %826 = vmatpush.xpose.msra.mxu0 %v807
    %827 = vmatmul.f32.gmra.mxu0 %v803
    %v828 = vpop.f32.mrf.mxu0
    %v829 = vadd.f32 %v50, %v828
    %830 = vmatmul.f32.gmra.mxu0 %v805
    %v831 = vpop.f32.mrf.mxu0
    %v832 = vadd.f32 %v51, %v831
    %833 = vdwg.mxu0
    %834 = vrot.lane.b32.xlu0 %v788, 96
    %v835 = vpop.permute.xlu0 %834
    %836 = vrot.lane.b32.xlu0 %v790, 96
    %v837 = vpop.permute.xlu0 %836
    %v838 = vsel %vm108, %v788, 0
    %v840 = vsel %vm108, %v790, 0
    %v842 = vsel %vm108, %v835, 0
    %v844 = vsel %vm108, %v837, 0
    %846 = vmatpush.xpose.msra.mxu0 0.0
    %847 = vmatpush.xpose.msra.mxu0 0.0
    %848 = vmatpush.xpose.msra.mxu0 0.0
    %849 = vmatpush.xpose.msra.mxu0 0.0
    %850 = vmatpush.xpose.msra.mxu0 0.0
    %851 = vmatpush.xpose.msra.mxu0 0.0
    %852 = vmatpush.xpose.msra.mxu0 0.0
    %853 = vmatpush.xpose.msra.mxu0 0.0
    %854 = vmatpush.xpose.msra.mxu0 0.0
    %855 = vmatpush.xpose.msra.mxu0 0.0
    %856 = vmatpush.xpose.msra.mxu0 0.0
    %857 = vmatpush.xpose.msra.mxu0 0.0
    %858 = vmatpush.xpose.msra.mxu0 0.0
    %859 = vmatpush.xpose.msra.mxu0 0.0
    %860 = vmatpush.xpose.msra.mxu0 %v844
    %861 = vmatpush.xpose.msra.mxu0 %v842
    %862 = vmatmul.f32.gmra.mxu0 %v838
    %v863 = vpop.f32.mrf.mxu0
    %v864 = vadd.f32 %v50, %v863
    %865 = vmatmul.f32.gmra.mxu0 %v840
    %v866 = vpop.f32.mrf.mxu0
    %v867 = vadd.f32 %v51, %v866
    %868 = vdwg.mxu0
    %869 = vrot.lane.b32.xlu0 %v792, 96
    %v870 = vpop.permute.xlu0 %869
    %871 = vrot.lane.b32.xlu0 %v794, 96
    %v872 = vpop.permute.xlu0 %871
    %v873 = vsel %vm108, %v792, 0
    %v875 = vsel %vm108, %v794, 0
    %v877 = vsel %vm108, %v870, 0
    %v879 = vsel %vm108, %v872, 0
    %881 = vmatpush.xpose.msra.mxu0 0.0
    %882 = vmatpush.xpose.msra.mxu0 0.0
    %883 = vmatpush.xpose.msra.mxu0 0.0
    %884 = vmatpush.xpose.msra.mxu0 0.0
    %885 = vmatpush.xpose.msra.mxu0 0.0
    %886 = vmatpush.xpose.msra.mxu0 0.0
    %887 = vmatpush.xpose.msra.mxu0 0.0
    %888 = vmatpush.xpose.msra.mxu0 0.0
    %889 = vmatpush.xpose.msra.mxu0 0.0
    %890 = vmatpush.xpose.msra.mxu0 0.0
    %891 = vmatpush.xpose.msra.mxu0 0.0
    %892 = vmatpush.xpose.msra.mxu0 0.0
    %893 = vmatpush.xpose.msra.mxu0 0.0
    %894 = vmatpush.xpose.msra.mxu0 0.0
    %895 = vmatpush.xpose.msra.mxu0 %v879
    %896 = vmatpush.xpose.msra.mxu0 %v877
    %897 = vmatmul.f32.gmra.mxu0 %v873
    %v898 = vpop.f32.mrf.mxu0
    %v899 = vadd.f32 %v50, %v898
    %900 = vmatmul.f32.gmra.mxu0 %v875
    %v901 = vpop.f32.mrf.mxu0
    %v902 = vadd.f32 %v51, %v901
    %903 = vdwg.mxu0
    %904 = vrot.lane.b32.xlu0 %v796, 96
    %v905 = vpop.permute.xlu0 %904
    %906 = vrot.lane.b32.xlu0 %v798, 96
    %v907 = vpop.permute.xlu0 %906
    %v908 = vsel %vm108, %v796, 0
    %v910 = vsel %vm108, %v798, 0
    %v912 = vsel %vm108, %v905, 0
    %v914 = vsel %vm108, %v907, 0
    %916 = vmatpush.xpose.msra.mxu0 0.0
    %917 = vmatpush.xpose.msra.mxu0 0.0
    %918 = vmatpush.xpose.msra.mxu0 0.0
    %919 = vmatpush.xpose.msra.mxu0 0.0
    %920 = vmatpush.xpose.msra.mxu0 0.0
    %921 = vmatpush.xpose.msra.mxu0 0.0
    %922 = vmatpush.xpose.msra.mxu0 0.0
    %923 = vmatpush.xpose.msra.mxu0 0.0
    %924 = vmatpush.xpose.msra.mxu0 0.0
    %925 = vmatpush.xpose.msra.mxu0 0.0
    %926 = vmatpush.xpose.msra.mxu0 0.0
    %927 = vmatpush.xpose.msra.mxu0 0.0
    %928 = vmatpush.xpose.msra.mxu0 0.0
    %929 = vmatpush.xpose.msra.mxu0 0.0
    %930 = vmatpush.xpose.msra.mxu0 %v914
    %931 = vmatpush.xpose.msra.mxu0 %v912
    %932 = vmatmul.f32.gmra.mxu0 %v908
    %v933 = vpop.f32.mrf.mxu0
    %v934 = vadd.f32 %v50, %v933
    %935 = vmatmul.f32.gmra.mxu0 %v910
    %v936 = vpop.f32.mrf.mxu0
    %v937 = vadd.f32 %v51, %v936
    %938 = vdwg.mxu0
    %v939 = vsel %vm245, %v829, -inf
    %940 = vmax.xlane.f32.xlu0 %v939
    %v941 = vpop.xlane.xlu0 %940
    %v942 = vsel %vm245, %v832, -inf
    %943 = vmax.xlane.f32.xlu0 %v942
    %v944 = vpop.xlane.xlu0 %943
    %v945 = vsel %vm245, %v864, -inf
    %946 = vmax.xlane.f32.xlu0 %v945
    %v947 = vpop.xlane.xlu0 %946
    %v948 = vsel %vm245, %v867, -inf
    %949 = vmax.xlane.f32.xlu0 %v948
    %v950 = vpop.xlane.xlu0 %949
    %v951 = vsel %vm245, %v899, -inf
    %952 = vmax.xlane.f32.xlu0 %v951
    %v953 = vpop.xlane.xlu0 %952
    %v954 = vsel %vm245, %v902, -inf
    %955 = vmax.xlane.f32.xlu0 %v954
    %v956 = vpop.xlane.xlu0 %955
    %v957 = vsel %vm245, %v934, -inf
    %958 = vmax.xlane.f32.xlu0 %v957
    %v959 = vpop.xlane.xlu0 %958
    %v960 = vsel %vm245, %v937, -inf
    %961 = vmax.xlane.f32.xlu0 %v960
    %v962 = vpop.xlane.xlu0 %961
    %v963 = vsub.f32 %v829, %v941
    %v964 = vsub.f32 %v832, %v944
    %v965 = vsub.f32 %v864, %v947
    %v966 = vsub.f32 %v867, %v950
    %v967 = vsub.f32 %v899, %v953
    %v968 = vsub.f32 %v902, %v956
    %v969 = vsub.f32 %v934, %v959
    %v970 = vsub.f32 %v937, %v962
    %v971 = vmul.f32 %v963, 1.442695
    %v972 = vpow.pop %v971
    %v973 = vmul.f32 %v964, 1.442695
    %v974 = vpow.pop %v973
    %v975 = vmul.f32 %v965, 1.442695
    %v976 = vpow.pop %v975
    %v977 = vmul.f32 %v966, 1.442695
    %v978 = vpow.pop %v977
    %v979 = vmul.f32 %v967, 1.442695
    %v980 = vpow.pop %v979
    %v981 = vmul.f32 %v968, 1.442695
    %v982 = vpow.pop %v981
    %v983 = vmul.f32 %v969, 1.442695
    %v984 = vpow.pop %v983
    %v985 = vmul.f32 %v970, 1.442695
    %v986 = vpow.pop %v985
    %v987 = vsel %vm245, %v972, 0.0
    %988 = vadd.xlane.f32.xlu0 %v987
    %v989 = vpop.xlane.xlu0 %988
    %v990 = vsel %vm245, %v974, 0.0
    %991 = vadd.xlane.f32.xlu0 %v990
    %v992 = vpop.xlane.xlu0 %991
    %v993 = vsel %vm245, %v976, 0.0
    %994 = vadd.xlane.f32.xlu0 %v993
    %v995 = vpop.xlane.xlu0 %994
    %v996 = vsel %vm245, %v978, 0.0
    %997 = vadd.xlane.f32.xlu0 %v996
    %v998 = vpop.xlane.xlu0 %997
    %v999 = vsel %vm245, %v980, 0.0
    %1000 = vadd.xlane.f32.xlu0 %v999
    %v1001 = vpop.xlane.xlu0 %1000
    %v1002 = vsel %vm245, %v982, 0.0
    %1003 = vadd.xlane.f32.xlu0 %v1002
    %v1004 = vpop.xlane.xlu0 %1003
    %v1005 = vsel %vm245, %v984, 0.0
    %1006 = vadd.xlane.f32.xlu0 %v1005
    %v1007 = vpop.xlane.xlu0 %1006
    %v1008 = vsel %vm245, %v986, 0.0
    %1009 = vadd.xlane.f32.xlu0 %v1008
    %v1010 = vpop.xlane.xlu0 %1009
    %v1011 = vrcp.pop %v989
    %v1012 = vrcp.pop %v992
    %v1013 = vrcp.pop %v995
    %v1014 = vrcp.pop %v998
    %v1015 = vrcp.pop %v1001
    %v1016 = vrcp.pop %v1004
    %v1017 = vrcp.pop %v1007
    %v1018 = vrcp.pop %v1010
    %v1019 = vmul.f32 %v972, %v1011
    %v1020 = vmul.f32 %v974, %v1012
    %v1021 = vmul.f32 %v976, %v1013
    %v1022 = vmul.f32 %v978, %v1014
    %v1023 = vmul.f32 %v980, %v1015
    %v1024 = vmul.f32 %v982, %v1016
    %v1025 = vmul.f32 %v984, %v1017
    %v1026 = vmul.f32 %v986, %v1018
    %1027 = vrot.lane.b32.xlu0 %v780, 64
    %v1028 = vpop.permute.xlu0 %1027
    %1029 = vrot.lane.b32.xlu0 %v783, 64
    %v1030 = vpop.permute.xlu0 %1029
    %v1034 = vsel %vm245, %v1019, 0
    %v1037 = vsel %vm245, %v1020, 0
    %1039 = vmatpush.msra.mxu0 0.0
    %1040 = vmatpush.msra.mxu0 0.0
    %1041 = vmatpush.msra.mxu0 0.0
    %1042 = vmatpush.msra.mxu0 0.0
    %1043 = vmatpush.msra.mxu0 0.0
    %1044 = vmatpush.msra.mxu0 0.0
    %1045 = vmatpush.msra.mxu0 0.0
    %1046 = vmatpush.msra.mxu0 0.0
    %1047 = vmatpush.msra.mxu0 0.0
    %1048 = vmatpush.msra.mxu0 0.0
    %1049 = vmatpush.msra.mxu0 0.0
    %1050 = vmatpush.msra.mxu0 0.0
    %1051 = vmatpush.msra.mxu0 0.0
    %1052 = vmatpush.msra.mxu0 0.0
    %1053 = vmatpush.msra.mxu0 %v1030
    %1054 = vmatpush.msra.mxu0 %v1028
    %1055 = vmatmul.f32.gmra.mxu0 %v1034
    %v1056 = vpop.f32.mrf.mxu0
    %v1057 = vadd.f32 0.0, %v1056
    %1058 = vmatmul.f32.gmra.mxu0 %v1037
    %v1059 = vpop.f32.mrf.mxu0
    %v1060 = vadd.f32 0.0, %v1059
    %1061 = vdwg.mxu0
    %1062 = vrot.lane.b32.xlu0 %v788, 64
    %v1063 = vpop.permute.xlu0 %1062
    %1064 = vrot.lane.b32.xlu0 %v790, 64
    %v1065 = vpop.permute.xlu0 %1064
    %v1069 = vsel %vm245, %v1021, 0
    %v1072 = vsel %vm245, %v1022, 0
    %1074 = vmatpush.msra.mxu0 0.0
    %1075 = vmatpush.msra.mxu0 0.0
    %1076 = vmatpush.msra.mxu0 0.0
    %1077 = vmatpush.msra.mxu0 0.0
    %1078 = vmatpush.msra.mxu0 0.0
    %1079 = vmatpush.msra.mxu0 0.0
    %1080 = vmatpush.msra.mxu0 0.0
    %1081 = vmatpush.msra.mxu0 0.0
    %1082 = vmatpush.msra.mxu0 0.0
    %1083 = vmatpush.msra.mxu0 0.0
    %1084 = vmatpush.msra.mxu0 0.0
    %1085 = vmatpush.msra.mxu0 0.0
    %1086 = vmatpush.msra.mxu0 0.0
    %1087 = vmatpush.msra.mxu0 0.0
    %1088 = vmatpush.msra.mxu0 %v1065
    %1089 = vmatpush.msra.mxu0 %v1063
    %1090 = vmatmul.f32.gmra.mxu0 %v1069
    %v1091 = vpop.f32.mrf.mxu0
    %v1092 = vadd.f32 0.0, %v1091
    %1093 = vmatmul.f32.gmra.mxu0 %v1072
    %v1094 = vpop.f32.mrf.mxu0
    %v1095 = vadd.f32 0.0, %v1094
    %1096 = vdwg.mxu0
    %1097 = vrot.lane.b32.xlu0 %v792, 64
    %v1098 = vpop.permute.xlu0 %1097
    %1099 = vrot.lane.b32.xlu0 %v794, 64
    %v1100 = vpop.permute.xlu0 %1099
    %v1104 = vsel %vm245, %v1023, 0
    %v1107 = vsel %vm245, %v1024, 0
    %1109 = vmatpush.msra.mxu0 0.0
    %1110 = vmatpush.msra.mxu0 0.0
    %1111 = vmatpush.msra.mxu0 0.0
    %1112 = vmatpush.msra.mxu0 0.0
    %1113 = vmatpush.msra.mxu0 0.0
    %1114 = vmatpush.msra.mxu0 0.0
    %1115 = vmatpush.msra.mxu0 0.0
    %1116 = vmatpush.msra.mxu0 0.0
    %1117 = vmatpush.msra.mxu0 0.0
    %1118 = vmatpush.msra.mxu0 0.0
    %1119 = vmatpush.msra.mxu0 0.0
    %1120 = vmatpush.msra.mxu0 0.0
    %1121 = vmatpush.msra.mxu0 0.0
    %1122 = vmatpush.msra.mxu0 0.0
    %1123 = vmatpush.msra.mxu0 %v1100
    %1124 = vmatpush.msra.mxu0 %v1098
    %1125 = vmatmul.f32.gmra.mxu0 %v1104
    %v1126 = vpop.f32.mrf.mxu0
    %v1127 = vadd.f32 0.0, %v1126
    %1128 = vmatmul.f32.gmra.mxu0 %v1107
    %v1129 = vpop.f32.mrf.mxu0
    %v1130 = vadd.f32 0.0, %v1129
    %1131 = vdwg.mxu0
    %1132 = vrot.lane.b32.xlu0 %v796, 64
    %v1133 = vpop.permute.xlu0 %1132
    %1134 = vrot.lane.b32.xlu0 %v798, 64
    %v1135 = vpop.permute.xlu0 %1134
    %v1139 = vsel %vm245, %v1025, 0
    %v1142 = vsel %vm245, %v1026, 0
    %1144 = vmatpush.msra.mxu0 0.0
    %1145 = vmatpush.msra.mxu0 0.0
    %1146 = vmatpush.msra.mxu0 0.0
    %1147 = vmatpush.msra.mxu0 0.0
    %1148 = vmatpush.msra.mxu0 0.0
    %1149 = vmatpush.msra.mxu0 0.0
    %1150 = vmatpush.msra.mxu0 0.0
    %1151 = vmatpush.msra.mxu0 0.0
    %1152 = vmatpush.msra.mxu0 0.0
    %1153 = vmatpush.msra.mxu0 0.0
    %1154 = vmatpush.msra.mxu0 0.0
    %1155 = vmatpush.msra.mxu0 0.0
    %1156 = vmatpush.msra.mxu0 0.0
    %1157 = vmatpush.msra.mxu0 0.0
    %1158 = vmatpush.msra.mxu0 %v1135
    %1159 = vmatpush.msra.mxu0 %v1133
    %1160 = vmatmul.f32.gmra.mxu0 %v1139
    %v1161 = vpop.f32.mrf.mxu0
    %v1162 = vadd.f32 0.0, %v1161
    %1163 = vmatmul.f32.gmra.mxu0 %v1142
    %v1164 = vpop.f32.mrf.mxu0
    %v1165 = vadd.f32 0.0, %v1164
    %1166 = vdwg.mxu0
    %1169 = vrot.lane.b32.xlu0 %v1092, 8
    %v1170 = vpop.permute.xlu0 %1169
    %1171 = vrot.lane.b32.xlu0 %v1095, 8
    %v1172 = vpop.permute.xlu0 %1171
    %1177 = vrot.lane.b32.xlu0 %v1127, 16
    %v1178 = vpop.permute.xlu0 %1177
    %1179 = vrot.lane.b32.xlu0 %v1130, 16
    %v1180 = vpop.permute.xlu0 %1179
    %1185 = vrot.lane.b32.xlu0 %v1162, 24
    %v1186 = vpop.permute.xlu0 %1185
    %1187 = vrot.lane.b32.xlu0 %v1165, 24
    %v1188 = vpop.permute.xlu0 %1187
    %v1191 = vsel %vm108, %v1057, %v1170
    %v1192 = vsel %vm108, %v1060, %v1172
    %v1193 = vsel %vm245, %v1191, %v1178
    %v1194 = vsel %vm245, %v1192, %v1180
    %v1195 = vsel %vm502, %v1193, %v1186
    %v1196 = vsel %vm502, %v1194, %v1188
    %s1197 = scalar_lea.vmem %s4, 32
    %v1198 = vld [vmem:[%s1197] sm:$0xff]
    %v1199 = vld [vmem:[%s1197 + $0x8] sm:$0xff]
    %v1200 = vld [vmem:[%s1197 + $0x10] sm:$0xff]
    %v1201 = vld [vmem:[%s1197 + $0x18] sm:$0xff]
    %s1202 = scalar_lea.vmem %s5, 1
    %v1203 = vld [vmem:[%s1202] sm:$0x1]
    %v1205 = vperm.slane %v1203, 0
    %v1208 = vsel %vm60, %v1195, 0
    %v1211 = vsel %vm60, %v1196, 0
    %1213 = vmatpush.msra.mxu0 0.0
    %1214 = vmatpush.msra.mxu0 0.0
    %1215 = vmatpush.msra.mxu0 0.0
    %1216 = vmatpush.msra.mxu0 0.0
    %1217 = vmatpush.msra.mxu0 0.0
    %1218 = vmatpush.msra.mxu0 0.0
    %1219 = vmatpush.msra.mxu0 0.0
    %1220 = vmatpush.msra.mxu0 0.0
    %1221 = vmatpush.msra.mxu0 0.0
    %1222 = vmatpush.msra.mxu0 0.0
    %1223 = vmatpush.msra.mxu0 0.0
    %1224 = vmatpush.msra.mxu0 0.0
    %1225 = vmatpush.msra.mxu0 %v1201
    %1226 = vmatpush.msra.mxu0 %v1200
    %1227 = vmatpush.msra.mxu0 %v1199
    %1228 = vmatpush.msra.mxu0 %v1198
    %1229 = vmatmul.f32.gmra.mxu0 %v1208
    %v1230 = vpop.f32.mrf.mxu0
    %v1231 = vadd.f32 %v1205, %v1230
    %1232 = vmatmul.f32.gmra.mxu0 %v1211
    %v1233 = vpop.f32.mrf.mxu0
    %v1234 = vadd.f32 %v1205, %v1233
    %1235 = vdwg.mxu0
    %v1236 = vadd.f32 %v744, %v1231
    %v1237 = vadd.f32 %v745, %v1234
    %s1238 = scalar_lea.vmem %s6, 1
    %v1239 = vld [vmem:[%s1238] sm:$0x1]
    %s1240 = scalar_lea.vmem %s7, 1
    %v1241 = vld [vmem:[%s1240] sm:$0x1]
    %v1242 = vsel %vm60, %v1236, 0.0
    %1243 = vadd.xlane.f32.xlu0 %v1242
    %v1244 = vpop.xlane.xlu0 %1243
    %v1245 = vsel %vm60, %v1237, 0.0
    %1246 = vadd.xlane.f32.xlu0 %v1245
    %v1247 = vpop.xlane.xlu0 %1246
    %v1248 = vmul.f32 %v1244, %v558
    %v1249 = vmul.f32 %v1247, %v558
    %v1250 = vsub.f32 %v1236, %v1248
    %v1251 = vsub.f32 %v1237, %v1249
    %v1252 = vmul.f32 %v1250, %v1250
    %v1253 = vmul.f32 %v1251, %v1251
    %v1254 = vsel %vm60, %v1252, 0.0
    %1255 = vadd.xlane.f32.xlu0 %v1254
    %v1256 = vpop.xlane.xlu0 %1255
    %v1257 = vsel %vm60, %v1253, 0.0
    %1258 = vadd.xlane.f32.xlu0 %v1257
    %v1259 = vpop.xlane.xlu0 %1258
    %v1260 = vmul.f32 %v1256, %v558
    %v1261 = vmul.f32 %v1259, %v558
    %v1262 = vadd.f32 %v1260, 1e-05
    %v1263 = vadd.f32 %v1261, 1e-05
    %v1264 = vrsqrt.pop %v1262
    %v1265 = vmul.f32 %v1264, %v1262
    %v1266 = vmul.f32 %v1265, %v1264
    %v1267 = vmul.f32 0.5, %v1266
    %v1268 = vsub.f32 1.5, %v1267
    %v1269 = vmul.f32 %v1264, %v1268
    %vm1270 = vweird.f32 %v1262
    %vm1271 = vweird.f32 %v1264
    %vm1272 = vmor %vm1270, %vm1271
    %v1273 = vsel %vm1272, %v1264, %v1269
    %v1274 = vrsqrt.pop %v1263
    %v1275 = vmul.f32 %v1274, %v1263
    %v1276 = vmul.f32 %v1275, %v1274
    %v1277 = vmul.f32 0.5, %v1276
    %v1278 = vsub.f32 1.5, %v1277
    %v1279 = vmul.f32 %v1274, %v1278
    %vm1280 = vweird.f32 %v1263
    %vm1281 = vweird.f32 %v1274
    %vm1282 = vmor %vm1280, %vm1281
    %v1283 = vsel %vm1282, %v1274, %v1279
    %v1284 = vmul.f32 %v1250, %v1273
    %v1285 = vmul.f32 %v1251, %v1283
    %v1287 = vperm.slane %v1239, 0
    %v1289 = vmul.f32 %v1284, %v1287
    %v1290 = vmul.f32 %v1285, %v1287
    %v1292 = vperm.slane %v1241, 0
    %v1294 = vadd.f32 %v1289, %v1292
    %v1295 = vadd.f32 %v1290, %v1292
    %s1296 = scalar_lea.vmem %s8, 32
    %v1297 = vld [vmem:[%s1296] sm:$0xff]
    %v1298 = vld [vmem:[%s1296 + $0x8] sm:$0xff]
    %v1299 = vld [vmem:[%s1296 + $0x10] sm:$0xff]
    %v1300 = vld [vmem:[%s1296 + $0x18] sm:$0xff]
    %s1301 = scalar_lea.vmem %s9, 1
    %v1302 = vld [vmem:[%s1301] sm:$0x1]
    %v1304 = vperm.slane %v1302, 0
    %v1307 = vsel %vm60, %v1294, 0
    %v1310 = vsel %vm60, %v1295, 0
    %1312 = vmatpush.msra.mxu0 0.0
    %1313 = vmatpush.msra.mxu0 0.0
    %1314 = vmatpush.msra.mxu0 0.0
    %1315 = vmatpush.msra.mxu0 0.0
    %1316 = vmatpush.msra.mxu0 0.0
    %1317 = vmatpush.msra.mxu0 0.0
    %1318 = vmatpush.msra.mxu0 0.0
    %1319 = vmatpush.msra.mxu0 0.0
    %1320 = vmatpush.msra.mxu0 0.0
    %1321 = vmatpush.msra.mxu0 0.0
    %1322 = vmatpush.msra.mxu0 0.0
    %1323 = vmatpush.msra.mxu0 0.0
    %1324 = vmatpush.msra.mxu0 %v1300
    %1325 = vmatpush.msra.mxu0 %v1299
    %1326 = vmatpush.msra.mxu0 %v1298
    %1327 = vmatpush.msra.mxu0 %v1297
    %1328 = vmatmul.f32.gmra.mxu0 %v1307
    %v1329 = vpop.f32.mrf.mxu0
    %v1330 = vadd.f32 %v1304, %v1329
    %1331 = vmatmul.f32.gmra.mxu0 %v1310
    %v1332 = vpop.f32.mrf.mxu0
    %v1333 = vadd.f32 %v1304, %v1332
    %1334 = vdwg.mxu0
    %v1335 = vmax.f32 %v1330, 0.0
    %v1336 = vmax.f32 %v1333, 0.0
    %s1337 = scalar_lea.vmem %s10, 64
    %v1338 = vld [vmem:[%s1337] sm:$0xff]
    %v1339 = vld [vmem:[%s1337 + $0x8] sm:$0xff]
    %v1340 = vld [vmem:[%s1337 + $0x10] sm:$0xff]
    %v1341 = vld [vmem:[%s1337 + $0x18] sm:$0xff]
    %v1342 = vld [vmem:[%s1337 + $0x20] sm:$0xff]
    %v1343 = vld [vmem:[%s1337 + $0x28] sm:$0xff]
    %v1344 = vld [vmem:[%s1337 + $0x30] sm:$0xff]
    %v1345 = vld [vmem:[%s1337 + $0x38] sm:$0xff]
    %s1346 = scalar_lea.vmem %s11, 1
    %v1347 = vld [vmem:[%s1346] sm:$0x1]
    %v1349 = vperm.slane %v1347, 0
    %v1352 = vsel %vm658, %v1335, 0
    %v1355 = vsel %vm658, %v1336, 0
    %1357 = vmatpush.msra.mxu0 0.0
    %1358 = vmatpush.msra.mxu0 0.0
    %1359 = vmatpush.msra.mxu0 0.0
    %1360 = vmatpush.msra.mxu0 0.0
    %1361 = vmatpush.msra.mxu0 0.0
    %1362 = vmatpush.msra.mxu0 0.0
    %1363 = vmatpush.msra.mxu0 0.0
    %1364 = vmatpush.msra.mxu0 0.0
    %1365 = vmatpush.msra.mxu0 %v1345
    %1366 = vmatpush.msra.mxu0 %v1344
    %1367 = vmatpush.msra.mxu0 %v1343
    %1368 = vmatpush.msra.mxu0 %v1342
    %1369 = vmatpush.msra.mxu0 %v1341
    %1370 = vmatpush.msra.mxu0 %v1340
    %1371 = vmatpush.msra.mxu0 %v1339
    %1372 = vmatpush.msra.mxu0 %v1338
    %1373 = vmatmul.f32.gmra.mxu0 %v1352
    %v1374 = vpop.f32.mrf.mxu0
    %v1375 = vadd.f32 %v1349, %v1374
    %1376 = vmatmul.f32.gmra.mxu0 %v1355
    %v1377 = vpop.f32.mrf.mxu0
    %v1378 = vadd.f32 %v1349, %v1377
    %1379 = vdwg.mxu0
    %v1380 = vadd.f32 %v1294, %v1375
    %v1381 = vadd.f32 %v1295, %v1378
    %s1382 = scalar_lea.vmem %s12, 1
    %v1383 = vld [vmem:[%s1382] sm:$0x1]
    %s1384 = scalar_lea.vmem %s13, 1
    %v1385 = vld [vmem:[%s1384] sm:$0x1]
    %v1386 = vsel %vm60, %v1380, 0.0
    %1387 = vadd.xlane.f32.xlu0 %v1386
    %v1388 = vpop.xlane.xlu0 %1387
    %v1389 = vsel %vm60, %v1381, 0.0
    %1390 = vadd.xlane.f32.xlu0 %v1389
    %v1391 = vpop.xlane.xlu0 %1390
    %v1392 = vmul.f32 %v1388, %v558
    %v1393 = vmul.f32 %v1391, %v558
    %v1394 = vsub.f32 %v1380, %v1392
    %v1395 = vsub.f32 %v1381, %v1393
    %v1396 = vmul.f32 %v1394, %v1394
    %v1397 = vmul.f32 %v1395, %v1395
    %v1398 = vsel %vm60, %v1396, 0.0
    %1399 = vadd.xlane.f32.xlu0 %v1398
    %v1400 = vpop.xlane.xlu0 %1399
    %v1401 = vsel %vm60, %v1397, 0.0
    %1402 = vadd.xlane.f32.xlu0 %v1401
    %v1403 = vpop.xlane.xlu0 %1402
    %v1404 = vmul.f32 %v1400, %v558
    %v1405 = vmul.f32 %v1403, %v558
    %v1406 = vadd.f32 %v1404, 1e-05
    %v1407 = vadd.f32 %v1405, 1e-05
    %v1408 = vrsqrt.pop %v1406
    %v1409 = vmul.f32 %v1408, %v1406
    %v1410 = vmul.f32 %v1409, %v1408
    %v1411 = vmul.f32 0.5, %v1410
    %v1412 = vsub.f32 1.5, %v1411
    %v1413 = vmul.f32 %v1408, %v1412
    %vm1414 = vweird.f32 %v1406
    %vm1415 = vweird.f32 %v1408
    %vm1416 = vmor %vm1414, %vm1415
    %v1417 = vsel %vm1416, %v1408, %v1413
    %v1418 = vrsqrt.pop %v1407
    %v1419 = vmul.f32 %v1418, %v1407
    %v1420 = vmul.f32 %v1419, %v1418
    %v1421 = vmul.f32 0.5, %v1420
    %v1422 = vsub.f32 1.5, %v1421
    %v1423 = vmul.f32 %v1418, %v1422
    %vm1424 = vweird.f32 %v1407
    %vm1425 = vweird.f32 %v1418
    %vm1426 = vmor %vm1424, %vm1425
    %v1427 = vsel %vm1426, %v1418, %v1423
    %v1428 = vmul.f32 %v1394, %v1417
    %v1429 = vmul.f32 %v1395, %v1427
    %v1431 = vperm.slane %v1383, 0
    %v1433 = vmul.f32 %v1428, %v1431
    %v1434 = vmul.f32 %v1429, %v1431
    %v1436 = vperm.slane %v1385, 0
    %v1438 = vadd.f32 %v1433, %v1436
    %v1439 = vadd.f32 %v1434, %v1436
    %1440 = vst.msk [vmem:[#allocation2] sm:$0xff] %vm60, %v1438
    %1441 = vst.msk [vmem:[#allocation2 + $0x8] sm:$0xff] %vm60, %v1439
    // Predicated region
    $region58: #{transformer_encoder_pallas.1} parent=1 // pred_check
      _
    $region59: #{transformer_encoder_pallas.1} parent=1 // pred_check_branch
      %1443 = sbr.rel (0) target = $region61
    $region60: #{transformer_encoder_pallas.1} parent=1 // pred_region
      %1445 = vsyncadd [#allocation3], 0
      %s1446 = sshll.u32 [#allocation2], 4
      %s1447 = int_to_ptr.vmem [resolvable:$true] %s1446
      %s1448 = sshll.u32 %s14, 4
      %s1449 = int_to_ptr.hbm [resolvable:$true] %s1448
      %1454 = dma.vmem_to_hbm [thread:$0]  %s1447, 256, %s1449, [#allocation3], 128, 128, 8
    $region61: #{transformer_encoder_pallas.1} parent=1 // pred_fallthru
      _
    // Predicated region
    $region62: #{transformer_encoder_pallas.1} parent=1 // pred_check
      _
    $region63: #{transformer_encoder_pallas.1} parent=1 // pred_check_branch
      %1456 = sbr.rel (0) target = $region65
    $region64: #{transformer_encoder_pallas.1} parent=1 // pred_region
      %1458 = dma.done [#allocation3], 256
    $region65: #{transformer_encoder_pallas.1} parent=1 // pred_fallthru
      _
    %1459 = vsyncpa [#allocation3], 1

</llo_original>
